<compile_context>
chip_gen: v7x
topology: tpu7x:2x2x1
jax: 0.10.0
libtpu: 0.0.40
codegen_flags: <defaults>
</compile_context>

<pallas_src>
import functools

import jax
import jax.numpy as jnp
from jax.experimental import pallas as pl
from jax.experimental.pallas import tpu as pltpu

TM, TN, TK = 512, 512, 1024     # matmul tile targets (full dim used when smaller)
LN_EPS = 1e-5


def _round_up(x, m):
    return ((x + m - 1) // m) * m


# --------------- fused matmul: LN prologue + bias/act/residual epilogue ------

def _epilogue(y, b_ref, r_ref, activation):
    if b_ref is not None:
        y = y + b_ref[...]
    if activation == "relu":
        y = jnp.maximum(y, 0.0)
    elif activation == "log_softmax":
        m = jnp.max(y, axis=-1, keepdims=True)
        s = y - m
        y = s - jnp.log(jnp.sum(jnp.exp(s), axis=-1, keepdims=True))
    if r_ref is not None:
        y = y + r_ref[...]
    return y


def _mm_kernel_single(*refs, has_ln, has_bias, has_res, activation):
    # Single K step: the full reduction row is resident, so LayerNorm can run in
    # the prologue and the result is written directly (no accumulator scratch).
    it = iter(refs)
    x_ref = next(it)
    w_ref = next(it)
    g_ref = next(it) if has_ln else None
    bln_ref = next(it) if has_ln else None
    b_ref = next(it) if has_bias else None
    r_ref = next(it) if has_res else None
    o_ref = next(it)

    if has_ln:
        x = x_ref[...].astype(jnp.float32)
        mu = jnp.mean(x, axis=-1, keepdims=True)
        var = jnp.mean(jnp.square(x - mu), axis=-1, keepdims=True)
        x = (x - mu) * jax.lax.rsqrt(var + LN_EPS)
        xb = (x * g_ref[...] + bln_ref[...]).astype(jnp.bfloat16)
    else:
        xb = x_ref[...].astype(jnp.bfloat16)

    y = jnp.dot(xb, w_ref[...], preferred_element_type=jnp.float32)
    o_ref[...] = _epilogue(y, b_ref, r_ref, activation).astype(o_ref.dtype)


def _mm_kernel_multi(*refs, has_bias, has_res, activation):
    # General K-accumulating path (not exercised at the demo shapes).
    it = iter(refs)
    x_ref = next(it)
    w_ref = next(it)
    b_ref = next(it) if has_bias else None
    r_ref = next(it) if has_res else None
    o_ref = next(it)
    acc_ref = next(it)

    @pl.when(pl.program_id(2) == 0)
    def _init():
        acc_ref[...] = jnp.zeros_like(acc_ref)

    acc_ref[...] += jnp.dot(x_ref[...].astype(jnp.bfloat16), w_ref[...],
                            preferred_element_type=jnp.float32)

    @pl.when(pl.program_id(2) == pl.num_programs(2) - 1)
    def _finalize():
        o_ref[...] = _epilogue(acc_ref[...], b_ref, r_ref,
                               activation).astype(o_ref.dtype)


def matmul(x, w, b=None, residual=None, ln=None, activation=None,
           out_dtype=jnp.float32):
    """Tiled x @ w with fused (optional) LayerNorm prologue and bias / relu /
    log_softmax / residual epilogue.

    x: [M, K]; w: [K, N] (pre-cast bf16); b: [1, N] f32; residual: [M, N] f32;
    ln: (gamma[1, K], beta[1, K]).  MXU inputs bf16, accumulation/epilogue f32.
    """
    M, K = x.shape
    Kw, N = w.shape
    assert K == Kw
    tm = min(M, TM)
    tn = min(N, TN)

    # log_softmax needs the whole row in one N tile; otherwise fall back.
    # TODO(synk): online max/sum across N tiles for large vocab.
    if activation == "log_softmax" and tn != N:
        out = matmul(x, w, b=b, residual=residual, ln=ln, activation=None)
        return log_softmax_rows(out).astype(out_dtype)

    if ln is not None and K > TK:
        x = layer_norm(x, ln[0], ln[1])     # LN row does not fit one K tile
        ln = None

    if w.dtype != jnp.bfloat16:
        w = w.astype(jnp.bfloat16)          # no-op for prepared params

    has_ln = ln is not None
    has_bias = b is not None
    has_res = residual is not None
    grid_m, grid_n = pl.cdiv(M, tm), pl.cdiv(N, tn)

    if K <= TK:
        inputs = [x, w]
        in_specs = [pl.BlockSpec((tm, K), lambda i, j: (i, 0)),
                    pl.BlockSpec((K, tn), lambda i, j: (0, j))]
        if has_ln:
            inputs += [ln[0].reshape(1, K).astype(jnp.float32),
                       ln[1].reshape(1, K).astype(jnp.float32)]
            in_specs += [pl.BlockSpec((1, K), lambda i, j: (0, 0)),
                         pl.BlockSpec((1, K), lambda i, j: (0, 0))]
        if has_bias:
            inputs.append(b.reshape(1, N).astype(jnp.float32))
            in_specs.append(pl.BlockSpec((1, tn), lambda i, j: (0, j)))
        if has_res:
            inputs.append(residual)
            in_specs.append(pl.BlockSpec((tm, tn), lambda i, j: (i, j)))
        kernel = functools.partial(_mm_kernel_single, has_ln=has_ln,
                                   has_bias=has_bias, has_res=has_res,
                                   activation=activation)
        return pl.pallas_call(
            kernel,
            out_shape=jax.ShapeDtypeStruct((M, N), out_dtype),
            grid=(grid_m, grid_n),
            in_specs=in_specs,
            out_specs=pl.BlockSpec((tm, tn), lambda i, j: (i, j)),
            compiler_params=pltpu.CompilerParams(
                dimension_semantics=("parallel", "parallel")),
        )(*inputs)

    # K > TK: zero-pad K only (reduction correctness), accumulate over K axis.
    tk = TK
    Kp = _round_up(K, tk)
    xp = jnp.pad(x, ((0, 0), (0, Kp - K))) if Kp != K else x
    wp = jnp.pad(w, ((0, Kp - K), (0, 0))) if Kp != K else w
    inputs = [xp, wp]
    in_specs = [pl.BlockSpec((tm, tk), lambda i, j, k: (i, k)),
                pl.BlockSpec((tk, tn), lambda i, j, k: (k, j))]
    if has_bias:
        inputs.append(b.reshape(1, N).astype(jnp.float32))
        in_specs.append(pl.BlockSpec((1, tn), lambda i, j, k: (0, j)))
    if has_res:
        inputs.append(residual)
        in_specs.append(pl.BlockSpec((tm, tn), lambda i, j, k: (i, j)))
    kernel = functools.partial(_mm_kernel_multi, has_bias=has_bias,
                               has_res=has_res, activation=activation)
    return pl.pallas_call(
        kernel,
        out_shape=jax.ShapeDtypeStruct((M, N), out_dtype),
        grid=(grid_m, grid_n, Kp // tk),
        in_specs=in_specs,
        out_specs=pl.BlockSpec((tm, tn), lambda i, j, k: (i, j)),
        scratch_shapes=[pltpu.VMEM((tm, tn), jnp.float32)],
        compiler_params=pltpu.CompilerParams(
            dimension_semantics=("parallel", "parallel", "arbitrary")),
    )(*inputs)


# ------------------- standalone fallbacks (not on the hot path) --------------

def _layernorm_kernel(x_ref, g_ref, b_ref, o_ref):
    x = x_ref[...].astype(jnp.float32)
    mu = jnp.mean(x, axis=-1, keepdims=True)
    var = jnp.mean(jnp.square(x - mu), axis=-1, keepdims=True)
    o_ref[...] = (x - mu) * jax.lax.rsqrt(var + LN_EPS) * g_ref[...] + b_ref[...]


def layer_norm(x2d, g, b):
    M, H = x2d.shape
    tm = min(M, 512)
    return pl.pallas_call(
        _layernorm_kernel,
        out_shape=jax.ShapeDtypeStruct((M, H), jnp.float32),
        grid=(pl.cdiv(M, tm),),
        in_specs=[pl.BlockSpec((tm, H), lambda i: (i, 0)),
                  pl.BlockSpec((1, H), lambda i: (0, 0)),
                  pl.BlockSpec((1, H), lambda i: (0, 0))],
        out_specs=pl.BlockSpec((tm, H), lambda i: (i, 0)),
        compiler_params=pltpu.CompilerParams(dimension_semantics=("parallel",)),
    )(x2d, g.reshape(1, H).astype(jnp.float32), b.reshape(1, H).astype(jnp.float32))


def _log_softmax_kernel(x_ref, o_ref):
    x = x_ref[...].astype(jnp.float32)
    m = jnp.max(x, axis=-1, keepdims=True)
    s = x - m
    o_ref[...] = s - jnp.log(jnp.sum(jnp.exp(s), axis=-1, keepdims=True))


def log_softmax_rows(x2d):
    M, N = x2d.shape
    tm = min(M, 256)
    return pl.pallas_call(
        _log_softmax_kernel,
        out_shape=jax.ShapeDtypeStruct((M, N), jnp.float32),
        grid=(pl.cdiv(M, tm),),
        in_specs=[pl.BlockSpec((tm, N), lambda i: (i, 0))],
        out_specs=pl.BlockSpec((tm, N), lambda i: (i, 0)),
        compiler_params=pltpu.CompilerParams(dimension_semantics=("parallel",)),
    )(x2d)


# ------------------------------- attention -----------------------------------

def _attention_kernel(q_ref, k_ref, v_ref, m_ref, o_ref, *, scale):
    # q_ref: (1, nh, Sq, dh) bf16; k/v_ref: (1, nh, Sk, dh) bf16;
    # m_ref: (1, Sq, Sk) f32 (1.0 == masked).
    q = q_ref[0]
    k = k_ref[0]
    v = v_ref[0]
    neg_bias = m_ref[0] * jnp.float32(-1e30)           # no NaN on masked rows

    # One batched dot_general over the head axis (no per-head loop / concat).
    s = jax.lax.dot_general(q, k, (((2,), (2,)), ((0,), (0,))),
                            preferred_element_type=jnp.float32)   # (nh, Sq, Sk)
    s = s * scale + neg_bias[None, :, :]
    mx = jnp.max(s, axis=-1, keepdims=True)
    p = jnp.exp(s - mx)
    denom = jnp.sum(p, axis=-1, keepdims=True)
    p = p * pl.reciprocal(denom, approx=True)
    ctx = jax.lax.dot_general(p.astype(jnp.bfloat16), v,
                              (((2,), (1,)), ((0,), (0,))),
                              preferred_element_type=jnp.float32)  # (nh, Sq, dh)
    o_ref[0] = ctx.astype(o_ref.dtype)


def attention(q, k, v, mask_f, scale):
    """q: [B, nh, Sq, dh] bf16; k/v: [B, nh, Sk, dh] bf16; mask_f: [B, Sq, Sk]."""
    B, nh, Sq, dh = q.shape
    Sk = k.shape[2]
    kernel = functools.partial(_attention_kernel, scale=scale)
    # NOTE(v7x): grid=(B,) gives B parallel points; for B < #TensorCores, split
    # heads across the grid instead.
    return pl.pallas_call(
        kernel,
        out_shape=jax.ShapeDtypeStruct((B, nh, Sq, dh), jnp.bfloat16),
        grid=(B,),
        in_specs=[pl.BlockSpec((1, nh, Sq, dh), lambda b: (b, 0, 0, 0)),
                  pl.BlockSpec((1, nh, Sk, dh), lambda b: (b, 0, 0, 0)),
                  pl.BlockSpec((1, nh, Sk, dh), lambda b: (b, 0, 0, 0)),
                  pl.BlockSpec((1, Sq, Sk), lambda b: (b, 0, 0))],
        out_specs=pl.BlockSpec((1, nh, Sq, dh), lambda b: (b, 0, 0, 0)),
        compiler_params=pltpu.CompilerParams(dimension_semantics=("parallel",)),
    )(q, k, v, mask_f.astype(jnp.float32))


# --------------------------- model building blocks ----------------------------

def _split_heads(t2d, B, S, nh, dh):
    return t2d.reshape(B, S, nh, dh).transpose(0, 2, 1, 3)       # (B, nh, S, dh)


def _merge_heads(t4d, B, S, H):
    return t4d.transpose(0, 2, 1, 3).reshape(B * S, H)


def mha_self(p, x, ln_g, ln_b, mask_f, n_heads):
    """Self-attention MultiHead with fused pre-LN QKV projection and fused
    residual add in the output projection."""
    B, S, H = x.shape
    dh = H // n_heads
    qkv = matmul(x.reshape(-1, H), p["w_qkv"], ln=(ln_g, ln_b),
                 out_dtype=jnp.bfloat16)                         # [B*S, 3H]
    q = _split_heads(qkv[:, :H], B, S, n_heads, dh)
    k = _split_heads(qkv[:, H:2 * H], B, S, n_heads, dh)
    v = _split_heads(qkv[:, 2 * H:], B, S, n_heads, dh)
    c = attention(q, k, v, mask_f, scale=1.0 / float(dh) ** 0.5)
    out = matmul(_merge_heads(c, B, S, H), p["w_o"], residual=x.reshape(-1, H))
    return out.reshape(B, S, H)


def mha_cross(p, x, kv, ln_g, ln_b, mask_f, n_heads):
    """Cross-attention: Q from LN(x), K/V from LN(kv) (same LN params, fused)."""
    B, Sq, H = x.shape
    Sk = kv.shape[1]
    dh = H // n_heads
    q2 = matmul(x.reshape(-1, H), p["w_q"], ln=(ln_g, ln_b), out_dtype=jnp.bfloat16)
    kv2 = matmul(kv.reshape(-1, H), p["w_kv"], ln=(ln_g, ln_b), out_dtype=jnp.bfloat16)
    q = _split_heads(q2, B, Sq, n_heads, dh)
    k = _split_heads(kv2[:, :H], B, Sk, n_heads, dh)
    v = _split_heads(kv2[:, H:], B, Sk, n_heads, dh)
    c = attention(q, k, v, mask_f, scale=1.0 / float(dh) ** 0.5)
    out = matmul(_merge_heads(c, B, Sq, H), p["w_o"], residual=x.reshape(-1, H))
    return out.reshape(B, Sq, H)


def feed_forward(p, x2d):
    """LN(fc_norm) + fc1 + ReLU fused; bias + residual fused into fc2."""
    h = matmul(x2d, p["fc_w1"], b=p["fc_b1"], ln=(p["fc_norm_g"], p["fc_norm_b"]),
               activation="relu", out_dtype=jnp.bfloat16)
    return matmul(h, p["fc_w2"], b=p["fc_b2"], residual=x2d)


def encoder_block(p, x, mask_f, n_heads):
    B, S, H = x.shape
    x = mha_self(p["attn"], x, p["attn_norm_g"], p["attn_norm_b"], mask_f, n_heads)
    x = feed_forward(p, x.reshape(-1, H)).reshape(B, S, H)
    return x


def decoder_block(p, x, kv, mask_f, future_f, n_heads):
    # prev is None path of the torch DecoderBlock (teacher-forced forward).
    B, Sy, H = x.shape
    x = mha_self(p["masked_attn"], x, p["mattn_norm_g"], p["mattn_norm_b"],
                 future_f, n_heads)
    x = mha_cross(p["attn"], x, kv, p["attn_norm_g"], p["attn_norm_b"],
                  mask_f, n_heads)
    x = feed_forward(p, x.reshape(-1, H)).reshape(B, Sy, H)
    return x


def make_pos_enc(hidden, max_len):
    # Matches the reference: 10000 ** (dim / hidden), dim in [0, hidden//2)
    pos = jnp.arange(max_len, dtype=jnp.float32)[:, None]
    dim = jnp.arange(hidden // 2, dtype=jnp.float32)[None, :]
    angle = pos / jnp.power(10000.0, dim / float(hidden))
    enc = jnp.zeros((max_len, hidden), jnp.float32)
    enc = enc.at[:, 0::2].set(jnp.sin(angle))
    enc = enc.at[:, 1::2].set(jnp.cos(angle))
    return enc


def generate_mask(lengths, max_len):
    idx = jnp.arange(max_len)[None, :]
    return idx >= jnp.asarray(lengths)[:, None]          # True == padding


def transformer_forward(params, x_tokens, x_lengths, y_tokens, n_splits):
    B, Sx = x_tokens.shape
    Sy = y_tokens.shape[1]
    H = params["emb_enc"].shape[1]

    pad = generate_mask(x_lengths, Sx).astype(jnp.float32)      # [B, Sx]
    mask_enc = jnp.broadcast_to(pad[:, None, :], (B, Sx, Sx))
    mask_dec = jnp.broadcast_to(pad[:, None, :], (B, Sy, Sx))
    future = jnp.triu(jnp.ones((Sy, Sy), jnp.float32), k=1)
    future_mask = jnp.broadcast_to(future[None], (B, Sy, Sy))

    # TODO(synk): embedding gather left to XLA (tiny; no win from a Pallas gather).
    z = jnp.take(params["emb_enc"], x_tokens, axis=0) + params["pos_enc"][None, :Sx, :]
    for p in params["encoder"]:
        z = encoder_block(p, z, mask_enc, n_splits)

    h = jnp.take(params["emb_dec"], y_tokens, axis=0) + params["pos_enc"][None, :Sy, :]
    for p in params["decoder"]:
        h = decoder_block(p, h, z, mask_dec, future_mask, n_splits)

    # generator: LayerNorm -> Linear -> LogSoftmax, all fused into one matmul.
    out = matmul(h.reshape(-1, H), params["gen_w"], b=params["gen_b"],
                 ln=(params["gen_norm_g"], params["gen_norm_b"]),
                 activation="log_softmax")
    return out.reshape(B, Sy, -1)


# ------------------------------ param init / prep -----------------------------

def init_params(key, input_size, hidden, output_size, n_enc, n_dec):
    def nxt():
        nonlocal key
        key, sub = jax.random.split(key)
        return sub

    def dense(i, o):
        return 0.02 * jax.random.normal(nxt(), (i, o), jnp.float32)

    def mh():
        return {"Wq": dense(hidden, hidden), "Wk": dense(hidden, hidden),
                "Wv": dense(hidden, hidden), "Wo": dense(hidden, hidden)}

    def enc_block():
        return {"attn": mh(),
                "attn_norm_g": jnp.ones((hidden,), jnp.float32),
                "attn_norm_b": jnp.zeros((hidden,), jnp.float32),
                "fc_w1": dense(hidden, 4 * hidden),
                "fc_b1": jnp.zeros((4 * hidden,), jnp.float32),
                "fc_w2": dense(4 * hidden, hidden),
                "fc_b2": jnp.zeros((hidden,), jnp.float32),
                "fc_norm_g": jnp.ones((hidden,), jnp.float32),
                "fc_norm_b": jnp.zeros((hidden,), jnp.float32)}

    def dec_block():
        blk = enc_block()
        blk.update({"masked_attn": mh(),
                    "mattn_norm_g": jnp.ones((hidden,), jnp.float32),
                    "mattn_norm_b": jnp.zeros((hidden,), jnp.float32)})
        return blk

    return {
        "emb_enc": 0.02 * jax.random.normal(nxt(), (input_size, hidden), jnp.float32),
        "emb_dec": 0.02 * jax.random.normal(nxt(), (output_size, hidden), jnp.float32),
        "pos_enc": make_pos_enc(hidden, 64),
        "encoder": [enc_block() for _ in range(n_enc)],
        "decoder": [dec_block() for _ in range(n_dec)],
        "gen_norm_g": jnp.ones((hidden,), jnp.float32),
        "gen_norm_b": jnp.zeros((hidden,), jnp.float32),
        "gen_w": dense(hidden, output_size),
        "gen_b": jnp.zeros((output_size,), jnp.float32),
    }


def prepare_params(raw):
    """One-time inference prep (outside the jitted forward): bf16 weight casts,
    pre-concatenated QKV / KV weights, (1, N) biases and LN params."""
    bf16 = lambda w: w.astype(jnp.bfloat16)
    row = lambda v: v.reshape(1, -1).astype(jnp.float32)

    def mh_self(m):
        return {"w_qkv": bf16(jnp.concatenate([m["Wq"], m["Wk"], m["Wv"]], axis=1)),
                "w_o": bf16(m["Wo"])}

    def mh_cross(m):
        return {"w_q": bf16(m["Wq"]),
                "w_kv": bf16(jnp.concatenate([m["Wk"], m["Wv"]], axis=1)),
                "w_o": bf16(m["Wo"])}

    def common(blk):
        return {"attn_norm_g": row(blk["attn_norm_g"]),
                "attn_norm_b": row(blk["attn_norm_b"]),
                "fc_norm_g": row(blk["fc_norm_g"]),
                "fc_norm_b": row(blk["fc_norm_b"]),
                "fc_w1": bf16(blk["fc_w1"]), "fc_b1": row(blk["fc_b1"]),
                "fc_w2": bf16(blk["fc_w2"]), "fc_b2": row(blk["fc_b2"])}

    def enc(blk):
        d = common(blk)
        d["attn"] = mh_self(blk["attn"])
        return d

    def dec(blk):
        d = common(blk)
        d["attn"] = mh_cross(blk["attn"])
        d["masked_attn"] = mh_self(blk["masked_attn"])
        d["mattn_norm_g"] = row(blk["mattn_norm_g"])
        d["mattn_norm_b"] = row(blk["mattn_norm_b"])
        return d

    return {"emb_enc": raw["emb_enc"], "emb_dec": raw["emb_dec"],
            "pos_enc": raw["pos_enc"],
            "encoder": [enc(b) for b in raw["encoder"]],
            "decoder": [dec(b) for b in raw["decoder"]],
            "gen_norm_g": row(raw["gen_norm_g"]),
            "gen_norm_b": row(raw["gen_norm_b"]),
            "gen_w": bf16(raw["gen_w"]), "gen_b": row(raw["gen_b"])}


# ---------------------------------- main ---------------------------------------

if __name__ == "__main__":
    INPUT_SIZE, HIDDEN, OUTPUT_SIZE = 16, 32, 16
    N_SPLITS, N_ENC, N_DEC = 4, 2, 2
    B, SX, SY = 2, 8, 8

    key = jax.random.PRNGKey(0)
    kp, kx, ky = jax.random.split(key, 3)
    raw_params = init_params(kp, INPUT_SIZE, HIDDEN, OUTPUT_SIZE, N_ENC, N_DEC)
    params = prepare_params(raw_params)     # bf16 cast / concat once, outside jit

    x_tokens = jax.random.randint(kx, (B, SX), 0, INPUT_SIZE, dtype=jnp.int32)
    y_tokens = jax.random.randint(ky, (B, SY), 0, OUTPUT_SIZE, dtype=jnp.int32)
    x_lengths = jnp.array([8, 5], dtype=jnp.int32)

    fwd = jax.jit(transformer_forward, static_argnames=("n_splits",))
    y_hat = fwd(params, x_tokens, x_lengths, y_tokens, n_splits=N_SPLITS)
    y_hat = jax.block_until_ready(y_hat)

    assert y_hat.shape == (B, SY, OUTPUT_SIZE)
    assert bool(jnp.all(jnp.isfinite(y_hat)))
    # log-softmax rows must sum to 1 in probability space
    assert bool(jnp.allclose(jnp.sum(jnp.exp(y_hat), axis=-1), 1.0, atol=1e-4))
    print("KERNEL_OK")
</pallas_src>

<mosaic_0001>
module attributes {stable_mosaic.version = 11 : i64} {
  func.func @_mm_kernel_single(%arg0: i32, %arg1: i32, %arg2: memref<16x32xf32, #tpu.memory_space<vmem>>, %arg3: memref<32x96xbf16, #tpu.memory_space<vmem>>, %arg4: memref<1x32xf32, #tpu.memory_space<vmem>>, %arg5: memref<1x32xf32, #tpu.memory_space<vmem>>, %arg6: memref<16x96xbf16, #tpu.memory_space<vmem>>) attributes {dimension_semantics = [#tpu.dimension_semantics<parallel>, #tpu.dimension_semantics<parallel>], iteration_bounds = array<i64: 1, 1>, scalar_prefetch = 0 : i64, scratch_operands = 0 : i64, tpu.core_type = #tpu.core_type<tc>, window_params = [{transform_indices = @transform_0, window_bounds = array<i64: 16, 32>}, {transform_indices = @transform_1, window_bounds = array<i64: 32, 96>}, {pipeline_mode = #tpu.pipeline_mode<synchronous>, transform_indices = @transform_2, window_bounds = array<i64: 1, 32>}, {pipeline_mode = #tpu.pipeline_mode<synchronous>, transform_indices = @transform_3, window_bounds = array<i64: 1, 32>}, {transform_indices = @transform_4, window_bounds = array<i64: 16, 96>}]} {
    %c0 = arith.constant 0 : index
    %c0_0 = arith.constant 0 : index
    %0 = vector.load %arg2[%c0, %c0_0] : memref<16x32xf32, #tpu.memory_space<vmem>>, vector<16x32xf32>
    %cst = arith.constant dense<0.000000e+00> : vector<16xf32>
    %1 = vector.multi_reduction <add>, %0, %cst [1] : vector<16x32xf32> to vector<16xf32>
    %2 = vector.shape_cast %1 : vector<16xf32> to vector<16x1xf32>
    %cst_1 = arith.constant 3.200000e+01 : f32
    %3 = vector.broadcast %cst_1 : f32 to vector<16x1xf32>
    %4 = arith.divf %2, %3 : vector<16x1xf32>
    %5 = vector.broadcast %4 : vector<16x1xf32> to vector<16x32xf32>
    %6 = arith.subf %0, %5 : vector<16x32xf32>
    %7 = arith.mulf %6, %6 : vector<16x32xf32>
    %cst_2 = arith.constant dense<0.000000e+00> : vector<16xf32>
    %8 = vector.multi_reduction <add>, %7, %cst_2 [1] : vector<16x32xf32> to vector<16xf32>
    %9 = vector.shape_cast %8 : vector<16xf32> to vector<16x1xf32>
    %cst_3 = arith.constant 3.200000e+01 : f32
    %10 = vector.broadcast %cst_3 : f32 to vector<16x1xf32>
    %11 = arith.divf %9, %10 : vector<16x1xf32>
    %12 = vector.broadcast %4 : vector<16x1xf32> to vector<16x32xf32>
    %13 = arith.subf %0, %12 : vector<16x32xf32>
    %cst_4 = arith.constant 9.99999974E-6 : f32
    %14 = vector.broadcast %cst_4 : f32 to vector<16x1xf32>
    %15 = arith.addf %11, %14 : vector<16x1xf32>
    %16 = math.rsqrt %15 : vector<16x1xf32>
    %17 = vector.broadcast %16 : vector<16x1xf32> to vector<16x32xf32>
    %18 = arith.mulf %13, %17 : vector<16x32xf32>
    %c0_5 = arith.constant 0 : index
    %c0_6 = arith.constant 0 : index
    %19 = vector.load %arg4[%c0_5, %c0_6] : memref<1x32xf32, #tpu.memory_space<vmem>>, vector<1x32xf32>
    %20 = vector.broadcast %19 : vector<1x32xf32> to vector<16x32xf32>
    %21 = arith.mulf %18, %20 : vector<16x32xf32>
    %c0_7 = arith.constant 0 : index
    %c0_8 = arith.constant 0 : index
    %22 = vector.load %arg5[%c0_7, %c0_8] : memref<1x32xf32, #tpu.memory_space<vmem>>, vector<1x32xf32>
    %23 = vector.broadcast %22 : vector<1x32xf32> to vector<16x32xf32>
    %24 = arith.addf %21, %23 : vector<16x32xf32>
    %25 = arith.truncf %24 : vector<16x32xf32> to vector<16x32xbf16>
    %c0_9 = arith.constant 0 : index
    %c0_10 = arith.constant 0 : index
    %26 = vector.load %arg3[%c0_9, %c0_10] : memref<32x96xbf16, #tpu.memory_space<vmem>>, vector<32x96xbf16>
    %cst_11 = arith.constant dense<0.000000e+00> : vector<16x96xf32>
    %27 = tpu.matmul %25, %26, %cst_11 {dimension_numbers = #tpu.dot_dimension_numbers<[1], [0], [0], [1], [0, 0, 1, 1], [], []>} : vector<16x32xbf16>, vector<32x96xbf16>, vector<16x96xf32> -> vector<16x96xf32>
    %28 = arith.truncf %27 : vector<16x96xf32> to vector<16x96xbf16>
    %c0_12 = arith.constant 0 : index
    %c0_13 = arith.constant 0 : index
    %29 = vector.load %arg6[%c0_12, %c0_13] : memref<16x96xbf16, #tpu.memory_space<vmem>>, vector<16x96xbf16>
    tpu.vector_store %arg6[%c0_12, %c0_13], %28 {strides = array<i32>} : memref<16x96xbf16, #tpu.memory_space<vmem>>, vector<16x96xbf16>,
    return
  }
  func.func @transform_0(%arg0: i32, %arg1: i32) -> (i32, i32) {
    %c0_i32 = arith.constant 0 : i32
    %c0_i32_0 = arith.constant 0 : i32
    return %arg0, %c0_i32 : i32, i32
  }
  func.func @transform_1(%arg0: i32, %arg1: i32) -> (i32, i32) {
    %c0_i32 = arith.constant 0 : i32
    %c0_i32_0 = arith.constant 0 : i32
    return %c0_i32, %arg1 : i32, i32
  }
  func.func @transform_2(%arg0: i32, %arg1: i32) -> (i32, i32) {
    %c0_i32 = arith.constant 0 : i32
    %c0_i32_0 = arith.constant 0 : i32
    %c0_i32_1 = arith.constant 0 : i32
    return %c0_i32, %c0_i32_0 : i32, i32
  }
  func.func @transform_3(%arg0: i32, %arg1: i32) -> (i32, i32) {
    %c0_i32 = arith.constant 0 : i32
    %c0_i32_0 = arith.constant 0 : i32
    %c0_i32_1 = arith.constant 0 : i32
    return %c0_i32, %c0_i32_0 : i32, i32
  }
  func.func @transform_4(%arg0: i32, %arg1: i32) -> (i32, i32) {
    %c0_i32 = arith.constant 0 : i32
    return %arg0, %arg1 : i32, i32
  }
}

module attributes {stable_mosaic.version = 11 : i64} {
  func.func @_mm_kernel_single(%arg0: i32, %arg1: i32, %arg2: memref<16x32xbf16, #tpu.memory_space<vmem>>, %arg3: memref<32x32xbf16, #tpu.memory_space<vmem>>, %arg4: memref<16x32xf32, #tpu.memory_space<vmem>>, %arg5: memref<16x32xf32, #tpu.memory_space<vmem>>) attributes {dimension_semantics = [#tpu.dimension_semantics<parallel>, #tpu.dimension_semantics<parallel>], iteration_bounds = array<i64: 1, 1>, scalar_prefetch = 0 : i64, scratch_operands = 0 : i64, tpu.core_type = #tpu.core_type<tc>, window_params = [{transform_indices = @transform_0, window_bounds = array<i64: 16, 32>}, {transform_indices = @transform_1, window_bounds = array<i64: 32, 32>}, {transform_indices = @transform_2, window_bounds = array<i64: 16, 32>}, {transform_indices = @transform_3, window_bounds = array<i64: 16, 32>}]} {
    %c0 = arith.constant 0 : index
    %c0_0 = arith.constant 0 : index
    %0 = vector.load %arg2[%c0, %c0_0] : memref<16x32xbf16, #tpu.memory_space<vmem>>, vector<16x32xbf16>
    %c0_1 = arith.constant 0 : index
    %c0_2 = arith.constant 0 : index
    %1 = vector.load %arg3[%c0_1, %c0_2] : memref<32x32xbf16, #tpu.memory_space<vmem>>, vector<32x32xbf16>
    %cst = arith.constant dense<0.000000e+00> : vector<16x32xf32>
    %2 = tpu.matmul %0, %1, %cst {dimension_numbers = #tpu.dot_dimension_numbers<[1], [0], [0], [1], [0, 0, 1, 1], [], []>} : vector<16x32xbf16>, vector<32x32xbf16>, vector<16x32xf32> -> vector<16x32xf32>
    %c0_3 = arith.constant 0 : index
    %c0_4 = arith.constant 0 : index
    %3 = vector.load %arg4[%c0_3, %c0_4] : memref<16x32xf32, #tpu.memory_space<vmem>>, vector<16x32xf32>
    %4 = arith.addf %2, %3 : vector<16x32xf32>
    %c0_5 = arith.constant 0 : index
    %c0_6 = arith.constant 0 : index
    %5 = vector.load %arg5[%c0_5, %c0_6] : memref<16x32xf32, #tpu.memory_space<vmem>>, vector<16x32xf32>
    tpu.vector_store %arg5[%c0_5, %c0_6], %4 {strides = array<i32>} : memref<16x32xf32, #tpu.memory_space<vmem>>, vector<16x32xf32>,
    return
  }
  func.func @transform_0(%arg0: i32, %arg1: i32) -> (i32, i32) {
    %c0_i32 = arith.constant 0 : i32
    %c0_i32_0 = arith.constant 0 : i32
    return %arg0, %c0_i32 : i32, i32
  }
  func.func @transform_1(%arg0: i32, %arg1: i32) -> (i32, i32) {
    %c0_i32 = arith.constant 0 : i32
    %c0_i32_0 = arith.constant 0 : i32
    return %c0_i32, %arg1 : i32, i32
  }
  func.func @transform_2(%arg0: i32, %arg1: i32) -> (i32, i32) {
    %c0_i32 = arith.constant 0 : i32
    return %arg0, %arg1 : i32, i32
  }
  func.func @transform_3(%arg0: i32, %arg1: i32) -> (i32, i32) {
    %c0_i32 = arith.constant 0 : i32
    return %arg0, %arg1 : i32, i32
  }
}

module attributes {stable_mosaic.version = 11 : i64} {
  func.func @_attention_kernel(%arg0: i32, %arg1: memref<1x4x8x8xbf16, #tpu.memory_space<vmem>>, %arg2: memref<1x4x8x8xbf16, #tpu.memory_space<vmem>>, %arg3: memref<1x4x8x8xbf16, #tpu.memory_space<vmem>>, %arg4: memref<1x8x8xf32, #tpu.memory_space<vmem>>, %arg5: memref<1x4x8x8xbf16, #tpu.memory_space<vmem>>) attributes {dimension_semantics = [#tpu.dimension_semantics<parallel>], iteration_bounds = array<i64: 2>, scalar_prefetch = 0 : i64, scratch_operands = 0 : i64, tpu.core_type = #tpu.core_type<tc>, window_params = [{transform_indices = @transform_0, window_bounds = array<i64: 1, 4, 8, 8>}, {transform_indices = @transform_1, window_bounds = array<i64: 1, 4, 8, 8>}, {transform_indices = @transform_2, window_bounds = array<i64: 1, 4, 8, 8>}, {transform_indices = @transform_3, window_bounds = array<i64: 1, 8, 8>}, {transform_indices = @transform_4, window_bounds = array<i64: 1, 4, 8, 8>}]} {
    %c0 = arith.constant 0 : index
    %c0_0 = arith.constant 0 : index
    %c0_1 = arith.constant 0 : index
    %c0_2 = arith.constant 0 : index
    %0 = vector.load %arg1[%c0, %c0_0, %c0_1, %c0_2] : memref<1x4x8x8xbf16, #tpu.memory_space<vmem>>, vector<1x4x8x8xbf16>
    %1 = vector.shape_cast %0 : vector<1x4x8x8xbf16> to vector<4x8x8xbf16>
    %c0_3 = arith.constant 0 : index
    %c0_4 = arith.constant 0 : index
    %c0_5 = arith.constant 0 : index
    %c0_6 = arith.constant 0 : index
    %2 = vector.load %arg2[%c0_3, %c0_4, %c0_5, %c0_6] : memref<1x4x8x8xbf16, #tpu.memory_space<vmem>>, vector<1x4x8x8xbf16>
    %3 = vector.shape_cast %2 : vector<1x4x8x8xbf16> to vector<4x8x8xbf16>
    %c0_7 = arith.constant 0 : index
    %c0_8 = arith.constant 0 : index
    %c0_9 = arith.constant 0 : index
    %c0_10 = arith.constant 0 : index
    %4 = vector.load %arg3[%c0_7, %c0_8, %c0_9, %c0_10] : memref<1x4x8x8xbf16, #tpu.memory_space<vmem>>, vector<1x4x8x8xbf16>
    %5 = vector.shape_cast %4 : vector<1x4x8x8xbf16> to vector<4x8x8xbf16>
    %c0_11 = arith.constant 0 : index
    %c0_12 = arith.constant 0 : index
    %c0_13 = arith.constant 0 : index
    %6 = vector.load %arg4[%c0_11, %c0_12, %c0_13] : memref<1x8x8xf32, #tpu.memory_space<vmem>>, vector<1x8x8xf32>
    %7 = vector.shape_cast %6 : vector<1x8x8xf32> to vector<8x8xf32>
    %cst = arith.constant -1.000000e+30 : f32
    %8 = vector.broadcast %cst : f32 to vector<8x8xf32>
    %9 = arith.mulf %7, %8 : vector<8x8xf32>
    %cst_14 = arith.constant dense<0.000000e+00> : vector<4x8x8xf32>
    %10 = tpu.matmul %1, %3, %cst_14 {dimension_numbers = #tpu.dot_dimension_numbers<[2], [2], [1], [1], [0, 0, 0, 1, 1, 1], [0], [0]>} : vector<4x8x8xbf16>, vector<4x8x8xbf16>, vector<4x8x8xf32> -> vector<4x8x8xf32>
    %cst_15 = arith.constant 0.353553385 : f32
    %11 = vector.broadcast %cst_15 : f32 to vector<4x8x8xf32>
    %12 = arith.mulf %10, %11 : vector<4x8x8xf32>
    %13 = vector.shape_cast %9 : vector<8x8xf32> to vector<1x8x8xf32>
    %14 = vector.broadcast %13 : vector<1x8x8xf32> to vector<4x8x8xf32>
    %15 = arith.addf %12, %14 : vector<4x8x8xf32>
    %cst_16 = arith.constant dense<0xFF800000> : vector<4x8xf32>
    %16 = vector.multi_reduction <maximumf>, %15, %cst_16 [2] : vector<4x8x8xf32> to vector<4x8xf32>
    %17 = vector.shape_cast %16 : vector<4x8xf32> to vector<4x8x1xf32>
    %18 = vector.broadcast %17 : vector<4x8x1xf32> to vector<4x8x8xf32>
    %19 = arith.subf %15, %18 : vector<4x8x8xf32>
    %20 = math.exp %19 : vector<4x8x8xf32>
    %cst_17 = arith.constant dense<0.000000e+00> : vector<4x8xf32>
    %21 = vector.multi_reduction <add>, %20, %cst_17 [2] : vector<4x8x8xf32> to vector<4x8xf32>
    %22 = vector.shape_cast %21 : vector<4x8xf32> to vector<4x8x1xf32>
    %23 = tpu.reciprocal %22 {approx = true} : vector<4x8x1xf32> -> vector<4x8x1xf32>
    %24 = vector.broadcast %23 : vector<4x8x1xf32> to vector<4x8x8xf32>
    %25 = arith.mulf %20, %24 : vector<4x8x8xf32>
    %26 = arith.truncf %25 : vector<4x8x8xf32> to vector<4x8x8xbf16>
    %cst_18 = arith.constant dense<0.000000e+00> : vector<4x8x8xf32>
    %27 = tpu.matmul %26, %5, %cst_18 {dimension_numbers = #tpu.dot_dimension_numbers<[2], [1], [1], [2], [0, 0, 0, 1, 1, 2], [0], [0]>} : vector<4x8x8xbf16>, vector<4x8x8xbf16>, vector<4x8x8xf32> -> vector<4x8x8xf32>
    %28 = arith.truncf %27 : vector<4x8x8xf32> to vector<4x8x8xbf16>
    %c0_19 = arith.constant 0 : index
    %c0_20 = arith.constant 0 : index
    %c0_21 = arith.constant 0 : index
    %c0_22 = arith.constant 0 : index
    %29 = vector.load %arg5[%c0_19, %c0_20, %c0_21, %c0_22] : memref<1x4x8x8xbf16, #tpu.memory_space<vmem>>, vector<1x4x8x8xbf16>
    %30 = vector.shape_cast %29 : vector<1x4x8x8xbf16> to vector<4x8x8xbf16>
    %31 = vector.shape_cast %28 : vector<4x8x8xbf16> to vector<1x4x8x8xbf16>
    tpu.vector_store %arg5[%c0_19, %c0_20, %c0_21, %c0_22], %31 {strides = array<i32>} : memref<1x4x8x8xbf16, #tpu.memory_space<vmem>>, vector<1x4x8x8xbf16>,
    return
  }
  func.func @transform_0(%arg0: i32) -> (i32, i32, i32, i32) {
    %c0_i32 = arith.constant 0 : i32
    %c0_i32_0 = arith.constant 0 : i32
    %c0_i32_1 = arith.constant 0 : i32
    %c0_i32_2 = arith.constant 0 : i32
    return %arg0, %c0_i32, %c0_i32_0, %c0_i32_1 : i32, i32, i32, i32
  }
  func.func @transform_1(%arg0: i32) -> (i32, i32, i32, i32) {
    %c0_i32 = arith.constant 0 : i32
    %c0_i32_0 = arith.constant 0 : i32
    %c0_i32_1 = arith.constant 0 : i32
    %c0_i32_2 = arith.constant 0 : i32
    return %arg0, %c0_i32, %c0_i32_0, %c0_i32_1 : i32, i32, i32, i32
  }
  func.func @transform_2(%arg0: i32) -> (i32, i32, i32, i32) {
    %c0_i32 = arith.constant 0 : i32
    %c0_i32_0 = arith.constant 0 : i32
    %c0_i32_1 = arith.constant 0 : i32
    %c0_i32_2 = arith.constant 0 : i32
    return %arg0, %c0_i32, %c0_i32_0, %c0_i32_1 : i32, i32, i32, i32
  }
  func.func @transform_3(%arg0: i32) -> (i32, i32, i32) {
    %c0_i32 = arith.constant 0 : i32
    %c0_i32_0 = arith.constant 0 : i32
    %c0_i32_1 = arith.constant 0 : i32
    return %arg0, %c0_i32, %c0_i32_0 : i32, i32, i32
  }
  func.func @transform_4(%arg0: i32) -> (i32, i32, i32, i32) {
    %c0_i32 = arith.constant 0 : i32
    %c0_i32_0 = arith.constant 0 : i32
    %c0_i32_1 = arith.constant 0 : i32
    %c0_i32_2 = arith.constant 0 : i32
    return %arg0, %c0_i32, %c0_i32_0, %c0_i32_1 : i32, i32, i32, i32
  }
}

module attributes {stable_mosaic.version = 11 : i64} {
  func.func @_mm_kernel_single(%arg0: i32, %arg1: i32, %arg2: memref<16x32xf32, #tpu.memory_space<vmem>>, %arg3: memref<32x32xbf16, #tpu.memory_space<vmem>>, %arg4: memref<1x32xf32, #tpu.memory_space<vmem>>, %arg5: memref<1x32xf32, #tpu.memory_space<vmem>>, %arg6: memref<16x32xbf16, #tpu.memory_space<vmem>>) attributes {dimension_semantics = [#tpu.dimension_semantics<parallel>, #tpu.dimension_semantics<parallel>], iteration_bounds = array<i64: 1, 1>, scalar_prefetch = 0 : i64, scratch_operands = 0 : i64, tpu.core_type = #tpu.core_type<tc>, window_params = [{transform_indices = @transform_0, window_bounds = array<i64: 16, 32>}, {transform_indices = @transform_1, window_bounds = array<i64: 32, 32>}, {pipeline_mode = #tpu.pipeline_mode<synchronous>, transform_indices = @transform_2, window_bounds = array<i64: 1, 32>}, {pipeline_mode = #tpu.pipeline_mode<synchronous>, transform_indices = @transform_3, window_bounds = array<i64: 1, 32>}, {transform_indices = @transform_4, window_bounds = array<i64: 16, 32>}]} {
    %c0 = arith.constant 0 : index
    %c0_0 = arith.constant 0 : index
    %0 = vector.load %arg2[%c0, %c0_0] : memref<16x32xf32, #tpu.memory_space<vmem>>, vector<16x32xf32>
    %cst = arith.constant dense<0.000000e+00> : vector<16xf32>
    %1 = vector.multi_reduction <add>, %0, %cst [1] : vector<16x32xf32> to vector<16xf32>
    %2 = vector.shape_cast %1 : vector<16xf32> to vector<16x1xf32>
    %cst_1 = arith.constant 3.200000e+01 : f32
    %3 = vector.broadcast %cst_1 : f32 to vector<16x1xf32>
    %4 = arith.divf %2, %3 : vector<16x1xf32>
    %5 = vector.broadcast %4 : vector<16x1xf32> to vector<16x32xf32>
    %6 = arith.subf %0, %5 : vector<16x32xf32>
    %7 = arith.mulf %6, %6 : vector<16x32xf32>
    %cst_2 = arith.constant dense<0.000000e+00> : vector<16xf32>
    %8 = vector.multi_reduction <add>, %7, %cst_2 [1] : vector<16x32xf32> to vector<16xf32>
    %9 = vector.shape_cast %8 : vector<16xf32> to vector<16x1xf32>
    %cst_3 = arith.constant 3.200000e+01 : f32
    %10 = vector.broadcast %cst_3 : f32 to vector<16x1xf32>
    %11 = arith.divf %9, %10 : vector<16x1xf32>
    %12 = vector.broadcast %4 : vector<16x1xf32> to vector<16x32xf32>
    %13 = arith.subf %0, %12 : vector<16x32xf32>
    %cst_4 = arith.constant 9.99999974E-6 : f32
    %14 = vector.broadcast %cst_4 : f32 to vector<16x1xf32>
    %15 = arith.addf %11, %14 : vector<16x1xf32>
    %16 = math.rsqrt %15 : vector<16x1xf32>
    %17 = vector.broadcast %16 : vector<16x1xf32> to vector<16x32xf32>
    %18 = arith.mulf %13, %17 : vector<16x32xf32>
    %c0_5 = arith.constant 0 : index
    %c0_6 = arith.constant 0 : index
    %19 = vector.load %arg4[%c0_5, %c0_6] : memref<1x32xf32, #tpu.memory_space<vmem>>, vector<1x32xf32>
    %20 = vector.broadcast %19 : vector<1x32xf32> to vector<16x32xf32>
    %21 = arith.mulf %18, %20 : vector<16x32xf32>
    %c0_7 = arith.constant 0 : index
    %c0_8 = arith.constant 0 : index
    %22 = vector.load %arg5[%c0_7, %c0_8] : memref<1x32xf32, #tpu.memory_space<vmem>>, vector<1x32xf32>
    %23 = vector.broadcast %22 : vector<1x32xf32> to vector<16x32xf32>
    %24 = arith.addf %21, %23 : vector<16x32xf32>
    %25 = arith.truncf %24 : vector<16x32xf32> to vector<16x32xbf16>
    %c0_9 = arith.constant 0 : index
    %c0_10 = arith.constant 0 : index
    %26 = vector.load %arg3[%c0_9, %c0_10] : memref<32x32xbf16, #tpu.memory_space<vmem>>, vector<32x32xbf16>
    %cst_11 = arith.constant dense<0.000000e+00> : vector<16x32xf32>
    %27 = tpu.matmul %25, %26, %cst_11 {dimension_numbers = #tpu.dot_dimension_numbers<[1], [0], [0], [1], [0, 0, 1, 1], [], []>} : vector<16x32xbf16>, vector<32x32xbf16>, vector<16x32xf32> -> vector<16x32xf32>
    %28 = arith.truncf %27 : vector<16x32xf32> to vector<16x32xbf16>
    %c0_12 = arith.constant 0 : index
    %c0_13 = arith.constant 0 : index
    %29 = vector.load %arg6[%c0_12, %c0_13] : memref<16x32xbf16, #tpu.memory_space<vmem>>, vector<16x32xbf16>
    tpu.vector_store %arg6[%c0_12, %c0_13], %28 {strides = array<i32>} : memref<16x32xbf16, #tpu.memory_space<vmem>>, vector<16x32xbf16>,
    return
  }
  func.func @transform_0(%arg0: i32, %arg1: i32) -> (i32, i32) {
    %c0_i32 = arith.constant 0 : i32
    %c0_i32_0 = arith.constant 0 : i32
    return %arg0, %c0_i32 : i32, i32
  }
  func.func @transform_1(%arg0: i32, %arg1: i32) -> (i32, i32) {
    %c0_i32 = arith.constant 0 : i32
    %c0_i32_0 = arith.constant 0 : i32
    return %c0_i32, %arg1 : i32, i32
  }
  func.func @transform_2(%arg0: i32, %arg1: i32) -> (i32, i32) {
    %c0_i32 = arith.constant 0 : i32
    %c0_i32_0 = arith.constant 0 : i32
    %c0_i32_1 = arith.constant 0 : i32
    return %c0_i32, %c0_i32_0 : i32, i32
  }
  func.func @transform_3(%arg0: i32, %arg1: i32) -> (i32, i32) {
    %c0_i32 = arith.constant 0 : i32
    %c0_i32_0 = arith.constant 0 : i32
    %c0_i32_1 = arith.constant 0 : i32
    return %c0_i32, %c0_i32_0 : i32, i32
  }
  func.func @transform_4(%arg0: i32, %arg1: i32) -> (i32, i32) {
    %c0_i32 = arith.constant 0 : i32
    return %arg0, %arg1 : i32, i32
  }
}

module attributes {stable_mosaic.version = 11 : i64} {
  func.func @_mm_kernel_single(%arg0: i32, %arg1: i32, %arg2: memref<16x32xf32, #tpu.memory_space<vmem>>, %arg3: memref<32x128xbf16, #tpu.memory_space<vmem>>, %arg4: memref<1x32xf32, #tpu.memory_space<vmem>>, %arg5: memref<1x32xf32, #tpu.memory_space<vmem>>, %arg6: memref<1x128xf32, #tpu.memory_space<vmem>>, %arg7: memref<16x128xbf16, #tpu.memory_space<vmem>>) attributes {dimension_semantics = [#tpu.dimension_semantics<parallel>, #tpu.dimension_semantics<parallel>], iteration_bounds = array<i64: 1, 1>, scalar_prefetch = 0 : i64, scratch_operands = 0 : i64, tpu.core_type = #tpu.core_type<tc>, window_params = [{transform_indices = @transform_0, window_bounds = array<i64: 16, 32>}, {transform_indices = @transform_1, window_bounds = array<i64: 32, 128>}, {pipeline_mode = #tpu.pipeline_mode<synchronous>, transform_indices = @transform_2, window_bounds = array<i64: 1, 32>}, {pipeline_mode = #tpu.pipeline_mode<synchronous>, transform_indices = @transform_3, window_bounds = array<i64: 1, 32>}, {transform_indices = @transform_4, window_bounds = array<i64: 1, 128>}, {transform_indices = @transform_5, window_bounds = array<i64: 16, 128>}]} {
    %c0 = arith.constant 0 : index
    %c0_0 = arith.constant 0 : index
    %0 = vector.load %arg2[%c0, %c0_0] : memref<16x32xf32, #tpu.memory_space<vmem>>, vector<16x32xf32>
    %cst = arith.constant dense<0.000000e+00> : vector<16xf32>
    %1 = vector.multi_reduction <add>, %0, %cst [1] : vector<16x32xf32> to vector<16xf32>
    %2 = vector.shape_cast %1 : vector<16xf32> to vector<16x1xf32>
    %cst_1 = arith.constant 3.200000e+01 : f32
    %3 = vector.broadcast %cst_1 : f32 to vector<16x1xf32>
    %4 = arith.divf %2, %3 : vector<16x1xf32>
    %5 = vector.broadcast %4 : vector<16x1xf32> to vector<16x32xf32>
    %6 = arith.subf %0, %5 : vector<16x32xf32>
    %7 = arith.mulf %6, %6 : vector<16x32xf32>
    %cst_2 = arith.constant dense<0.000000e+00> : vector<16xf32>
    %8 = vector.multi_reduction <add>, %7, %cst_2 [1] : vector<16x32xf32> to vector<16xf32>
    %9 = vector.shape_cast %8 : vector<16xf32> to vector<16x1xf32>
    %cst_3 = arith.constant 3.200000e+01 : f32
    %10 = vector.broadcast %cst_3 : f32 to vector<16x1xf32>
    %11 = arith.divf %9, %10 : vector<16x1xf32>
    %12 = vector.broadcast %4 : vector<16x1xf32> to vector<16x32xf32>
    %13 = arith.subf %0, %12 : vector<16x32xf32>
    %cst_4 = arith.constant 9.99999974E-6 : f32
    %14 = vector.broadcast %cst_4 : f32 to vector<16x1xf32>
    %15 = arith.addf %11, %14 : vector<16x1xf32>
    %16 = math.rsqrt %15 : vector<16x1xf32>
    %17 = vector.broadcast %16 : vector<16x1xf32> to vector<16x32xf32>
    %18 = arith.mulf %13, %17 : vector<16x32xf32>
    %c0_5 = arith.constant 0 : index
    %c0_6 = arith.constant 0 : index
    %19 = vector.load %arg4[%c0_5, %c0_6] : memref<1x32xf32, #tpu.memory_space<vmem>>, vector<1x32xf32>
    %20 = vector.broadcast %19 : vector<1x32xf32> to vector<16x32xf32>
    %21 = arith.mulf %18, %20 : vector<16x32xf32>
    %c0_7 = arith.constant 0 : index
    %c0_8 = arith.constant 0 : index
    %22 = vector.load %arg5[%c0_7, %c0_8] : memref<1x32xf32, #tpu.memory_space<vmem>>, vector<1x32xf32>
    %23 = vector.broadcast %22 : vector<1x32xf32> to vector<16x32xf32>
    %24 = arith.addf %21, %23 : vector<16x32xf32>
    %25 = arith.truncf %24 : vector<16x32xf32> to vector<16x32xbf16>
    %c0_9 = arith.constant 0 : index
    %c0_10 = arith.constant 0 : index
    %26 = vector.load %arg3[%c0_9, %c0_10] : memref<32x128xbf16, #tpu.memory_space<vmem>>, vector<32x128xbf16>
    %cst_11 = arith.constant dense<0.000000e+00> : vector<16x128xf32>
    %27 = tpu.matmul %25, %26, %cst_11 {dimension_numbers = #tpu.dot_dimension_numbers<[1], [0], [0], [1], [0, 0, 1, 1], [], []>} : vector<16x32xbf16>, vector<32x128xbf16>, vector<16x128xf32> -> vector<16x128xf32>
    %c0_12 = arith.constant 0 : index
    %c0_13 = arith.constant 0 : index
    %28 = vector.load %arg6[%c0_12, %c0_13] : memref<1x128xf32, #tpu.memory_space<vmem>>, vector<1x128xf32>
    %29 = vector.broadcast %28 : vector<1x128xf32> to vector<16x128xf32>
    %30 = arith.addf %27, %29 : vector<16x128xf32>
    %cst_14 = arith.constant 0.000000e+00 : f32
    %31 = vector.broadcast %cst_14 : f32 to vector<16x128xf32>
    %32 = arith.maximumf %30, %31 : vector<16x128xf32>
    %33 = arith.truncf %32 : vector<16x128xf32> to vector<16x128xbf16>
    %c0_15 = arith.constant 0 : index
    %c0_16 = arith.constant 0 : index
    %34 = vector.load %arg7[%c0_15, %c0_16] : memref<16x128xbf16, #tpu.memory_space<vmem>>, vector<16x128xbf16>
    tpu.vector_store %arg7[%c0_15, %c0_16], %33 {strides = array<i32>} : memref<16x128xbf16, #tpu.memory_space<vmem>>, vector<16x128xbf16>,
    return
  }
  func.func @transform_0(%arg0: i32, %arg1: i32) -> (i32, i32) {
    %c0_i32 = arith.constant 0 : i32
    %c0_i32_0 = arith.constant 0 : i32
    return %arg0, %c0_i32 : i32, i32
  }
  func.func @transform_1(%arg0: i32, %arg1: i32) -> (i32, i32) {
    %c0_i32 = arith.constant 0 : i32
    %c0_i32_0 = arith.constant 0 : i32
    return %c0_i32, %arg1 : i32, i32
  }
  func.func @transform_2(%arg0: i32, %arg1: i32) -> (i32, i32) {
    %c0_i32 = arith.constant 0 : i32
    %c0_i32_0 = arith.constant 0 : i32
    %c0_i32_1 = arith.constant 0 : i32
    return %c0_i32, %c0_i32_0 : i32, i32
  }
  func.func @transform_3(%arg0: i32, %arg1: i32) -> (i32, i32) {
    %c0_i32 = arith.constant 0 : i32
    %c0_i32_0 = arith.constant 0 : i32
    %c0_i32_1 = arith.constant 0 : i32
    return %c0_i32, %c0_i32_0 : i32, i32
  }
  func.func @transform_4(%arg0: i32, %arg1: i32) -> (i32, i32) {
    %c0_i32 = arith.constant 0 : i32
    %c0_i32_0 = arith.constant 0 : i32
    return %c0_i32, %arg1 : i32, i32
  }
  func.func @transform_5(%arg0: i32, %arg1: i32) -> (i32, i32) {
    %c0_i32 = arith.constant 0 : i32
    return %arg0, %arg1 : i32, i32
  }
}

module attributes {stable_mosaic.version = 11 : i64} {
  func.func @_mm_kernel_single(%arg0: i32, %arg1: i32, %arg2: memref<16x128xbf16, #tpu.memory_space<vmem>>, %arg3: memref<128x32xbf16, #tpu.memory_space<vmem>>, %arg4: memref<1x32xf32, #tpu.memory_space<vmem>>, %arg5: memref<16x32xf32, #tpu.memory_space<vmem>>, %arg6: memref<16x32xf32, #tpu.memory_space<vmem>>) attributes {dimension_semantics = [#tpu.dimension_semantics<parallel>, #tpu.dimension_semantics<parallel>], iteration_bounds = array<i64: 1, 1>, scalar_prefetch = 0 : i64, scratch_operands = 0 : i64, tpu.core_type = #tpu.core_type<tc>, window_params = [{transform_indices = @transform_0, window_bounds = array<i64: 16, 128>}, {transform_indices = @transform_1, window_bounds = array<i64: 128, 32>}, {transform_indices = @transform_2, window_bounds = array<i64: 1, 32>}, {transform_indices = @transform_3, window_bounds = array<i64: 16, 32>}, {transform_indices = @transform_4, window_bounds = array<i64: 16, 32>}]} {
    %c0 = arith.constant 0 : index
    %c0_0 = arith.constant 0 : index
    %0 = vector.load %arg2[%c0, %c0_0] : memref<16x128xbf16, #tpu.memory_space<vmem>>, vector<16x128xbf16>
    %c0_1 = arith.constant 0 : index
    %c0_2 = arith.constant 0 : index
    %1 = vector.load %arg3[%c0_1, %c0_2] : memref<128x32xbf16, #tpu.memory_space<vmem>>, vector<128x32xbf16>
    %cst = arith.constant dense<0.000000e+00> : vector<16x32xf32>
    %2 = tpu.matmul %0, %1, %cst {dimension_numbers = #tpu.dot_dimension_numbers<[1], [0], [0], [1], [0, 0, 1, 1], [], []>} : vector<16x128xbf16>, vector<128x32xbf16>, vector<16x32xf32> -> vector<16x32xf32>
    %c0_3 = arith.constant 0 : index
    %c0_4 = arith.constant 0 : index
    %3 = vector.load %arg4[%c0_3, %c0_4] : memref<1x32xf32, #tpu.memory_space<vmem>>, vector<1x32xf32>
    %4 = vector.broadcast %3 : vector<1x32xf32> to vector<16x32xf32>
    %5 = arith.addf %2, %4 : vector<16x32xf32>
    %c0_5 = arith.constant 0 : index
    %c0_6 = arith.constant 0 : index
    %6 = vector.load %arg5[%c0_5, %c0_6] : memref<16x32xf32, #tpu.memory_space<vmem>>, vector<16x32xf32>
    %7 = arith.addf %5, %6 : vector<16x32xf32>
    %c0_7 = arith.constant 0 : index
    %c0_8 = arith.constant 0 : index
    %8 = vector.load %arg6[%c0_7, %c0_8] : memref<16x32xf32, #tpu.memory_space<vmem>>, vector<16x32xf32>
    tpu.vector_store %arg6[%c0_7, %c0_8], %7 {strides = array<i32>} : memref<16x32xf32, #tpu.memory_space<vmem>>, vector<16x32xf32>,
    return
  }
  func.func @transform_0(%arg0: i32, %arg1: i32) -> (i32, i32) {
    %c0_i32 = arith.constant 0 : i32
    %c0_i32_0 = arith.constant 0 : i32
    return %arg0, %c0_i32 : i32, i32
  }
  func.func @transform_1(%arg0: i32, %arg1: i32) -> (i32, i32) {
    %c0_i32 = arith.constant 0 : i32
    %c0_i32_0 = arith.constant 0 : i32
    return %c0_i32, %arg1 : i32, i32
  }
  func.func @transform_2(%arg0: i32, %arg1: i32) -> (i32, i32) {
    %c0_i32 = arith.constant 0 : i32
    %c0_i32_0 = arith.constant 0 : i32
    return %c0_i32, %arg1 : i32, i32
  }
  func.func @transform_3(%arg0: i32, %arg1: i32) -> (i32, i32) {
    %c0_i32 = arith.constant 0 : i32
    return %arg0, %arg1 : i32, i32
  }
  func.func @transform_4(%arg0: i32, %arg1: i32) -> (i32, i32) {
    %c0_i32 = arith.constant 0 : i32
    return %arg0, %arg1 : i32, i32
  }
}

module attributes {stable_mosaic.version = 11 : i64} {
  func.func @_mm_kernel_single(%arg0: i32, %arg1: i32, %arg2: memref<16x32xf32, #tpu.memory_space<vmem>>, %arg3: memref<32x64xbf16, #tpu.memory_space<vmem>>, %arg4: memref<1x32xf32, #tpu.memory_space<vmem>>, %arg5: memref<1x32xf32, #tpu.memory_space<vmem>>, %arg6: memref<16x64xbf16, #tpu.memory_space<vmem>>) attributes {dimension_semantics = [#tpu.dimension_semantics<parallel>, #tpu.dimension_semantics<parallel>], iteration_bounds = array<i64: 1, 1>, scalar_prefetch = 0 : i64, scratch_operands = 0 : i64, tpu.core_type = #tpu.core_type<tc>, window_params = [{transform_indices = @transform_0, window_bounds = array<i64: 16, 32>}, {transform_indices = @transform_1, window_bounds = array<i64: 32, 64>}, {pipeline_mode = #tpu.pipeline_mode<synchronous>, transform_indices = @transform_2, window_bounds = array<i64: 1, 32>}, {pipeline_mode = #tpu.pipeline_mode<synchronous>, transform_indices = @transform_3, window_bounds = array<i64: 1, 32>}, {transform_indices = @transform_4, window_bounds = array<i64: 16, 64>}]} {
    %c0 = arith.constant 0 : index
    %c0_0 = arith.constant 0 : index
    %0 = vector.load %arg2[%c0, %c0_0] : memref<16x32xf32, #tpu.memory_space<vmem>>, vector<16x32xf32>
    %cst = arith.constant dense<0.000000e+00> : vector<16xf32>
    %1 = vector.multi_reduction <add>, %0, %cst [1] : vector<16x32xf32> to vector<16xf32>
    %2 = vector.shape_cast %1 : vector<16xf32> to vector<16x1xf32>
    %cst_1 = arith.constant 3.200000e+01 : f32
    %3 = vector.broadcast %cst_1 : f32 to vector<16x1xf32>
    %4 = arith.divf %2, %3 : vector<16x1xf32>
    %5 = vector.broadcast %4 : vector<16x1xf32> to vector<16x32xf32>
    %6 = arith.subf %0, %5 : vector<16x32xf32>
    %7 = arith.mulf %6, %6 : vector<16x32xf32>
    %cst_2 = arith.constant dense<0.000000e+00> : vector<16xf32>
    %8 = vector.multi_reduction <add>, %7, %cst_2 [1] : vector<16x32xf32> to vector<16xf32>
    %9 = vector.shape_cast %8 : vector<16xf32> to vector<16x1xf32>
    %cst_3 = arith.constant 3.200000e+01 : f32
    %10 = vector.broadcast %cst_3 : f32 to vector<16x1xf32>
    %11 = arith.divf %9, %10 : vector<16x1xf32>
    %12 = vector.broadcast %4 : vector<16x1xf32> to vector<16x32xf32>
    %13 = arith.subf %0, %12 : vector<16x32xf32>
    %cst_4 = arith.constant 9.99999974E-6 : f32
    %14 = vector.broadcast %cst_4 : f32 to vector<16x1xf32>
    %15 = arith.addf %11, %14 : vector<16x1xf32>
    %16 = math.rsqrt %15 : vector<16x1xf32>
    %17 = vector.broadcast %16 : vector<16x1xf32> to vector<16x32xf32>
    %18 = arith.mulf %13, %17 : vector<16x32xf32>
    %c0_5 = arith.constant 0 : index
    %c0_6 = arith.constant 0 : index
    %19 = vector.load %arg4[%c0_5, %c0_6] : memref<1x32xf32, #tpu.memory_space<vmem>>, vector<1x32xf32>
    %20 = vector.broadcast %19 : vector<1x32xf32> to vector<16x32xf32>
    %21 = arith.mulf %18, %20 : vector<16x32xf32>
    %c0_7 = arith.constant 0 : index
    %c0_8 = arith.constant 0 : index
    %22 = vector.load %arg5[%c0_7, %c0_8] : memref<1x32xf32, #tpu.memory_space<vmem>>, vector<1x32xf32>
    %23 = vector.broadcast %22 : vector<1x32xf32> to vector<16x32xf32>
    %24 = arith.addf %21, %23 : vector<16x32xf32>
    %25 = arith.truncf %24 : vector<16x32xf32> to vector<16x32xbf16>
    %c0_9 = arith.constant 0 : index
    %c0_10 = arith.constant 0 : index
    %26 = vector.load %arg3[%c0_9, %c0_10] : memref<32x64xbf16, #tpu.memory_space<vmem>>, vector<32x64xbf16>
    %cst_11 = arith.constant dense<0.000000e+00> : vector<16x64xf32>
    %27 = tpu.matmul %25, %26, %cst_11 {dimension_numbers = #tpu.dot_dimension_numbers<[1], [0], [0], [1], [0, 0, 1, 1], [], []>} : vector<16x32xbf16>, vector<32x64xbf16>, vector<16x64xf32> -> vector<16x64xf32>
    %28 = arith.truncf %27 : vector<16x64xf32> to vector<16x64xbf16>
    %c0_12 = arith.constant 0 : index
    %c0_13 = arith.constant 0 : index
    %29 = vector.load %arg6[%c0_12, %c0_13] : memref<16x64xbf16, #tpu.memory_space<vmem>>, vector<16x64xbf16>
    tpu.vector_store %arg6[%c0_12, %c0_13], %28 {strides = array<i32>} : memref<16x64xbf16, #tpu.memory_space<vmem>>, vector<16x64xbf16>,
    return
  }
  func.func @transform_0(%arg0: i32, %arg1: i32) -> (i32, i32) {
    %c0_i32 = arith.constant 0 : i32
    %c0_i32_0 = arith.constant 0 : i32
    return %arg0, %c0_i32 : i32, i32
  }
  func.func @transform_1(%arg0: i32, %arg1: i32) -> (i32, i32) {
    %c0_i32 = arith.constant 0 : i32
    %c0_i32_0 = arith.constant 0 : i32
    return %c0_i32, %arg1 : i32, i32
  }
  func.func @transform_2(%arg0: i32, %arg1: i32) -> (i32, i32) {
    %c0_i32 = arith.constant 0 : i32
    %c0_i32_0 = arith.constant 0 : i32
    %c0_i32_1 = arith.constant 0 : i32
    return %c0_i32, %c0_i32_0 : i32, i32
  }
  func.func @transform_3(%arg0: i32, %arg1: i32) -> (i32, i32) {
    %c0_i32 = arith.constant 0 : i32
    %c0_i32_0 = arith.constant 0 : i32
    %c0_i32_1 = arith.constant 0 : i32
    return %c0_i32, %c0_i32_0 : i32, i32
  }
  func.func @transform_4(%arg0: i32, %arg1: i32) -> (i32, i32) {
    %c0_i32 = arith.constant 0 : i32
    return %arg0, %arg1 : i32, i32
  }
}

module attributes {stable_mosaic.version = 11 : i64} {
  func.func @_mm_kernel_single(%arg0: i32, %arg1: i32, %arg2: memref<16x32xf32, #tpu.memory_space<vmem>>, %arg3: memref<32x16xbf16, #tpu.memory_space<vmem>>, %arg4: memref<1x32xf32, #tpu.memory_space<vmem>>, %arg5: memref<1x32xf32, #tpu.memory_space<vmem>>, %arg6: memref<1x16xf32, #tpu.memory_space<vmem>>, %arg7: memref<16x16xf32, #tpu.memory_space<vmem>>) attributes {dimension_semantics = [#tpu.dimension_semantics<parallel>, #tpu.dimension_semantics<parallel>], iteration_bounds = array<i64: 1, 1>, scalar_prefetch = 0 : i64, scratch_operands = 0 : i64, tpu.core_type = #tpu.core_type<tc>, window_params = [{transform_indices = @transform_0, window_bounds = array<i64: 16, 32>}, {transform_indices = @transform_1, window_bounds = array<i64: 32, 16>}, {pipeline_mode = #tpu.pipeline_mode<synchronous>, transform_indices = @transform_2, window_bounds = array<i64: 1, 32>}, {pipeline_mode = #tpu.pipeline_mode<synchronous>, transform_indices = @transform_3, window_bounds = array<i64: 1, 32>}, {transform_indices = @transform_4, window_bounds = array<i64: 1, 16>}, {transform_indices = @transform_5, window_bounds = array<i64: 16, 16>}]} {
    %c0 = arith.constant 0 : index
    %c0_0 = arith.constant 0 : index
    %0 = vector.load %arg2[%c0, %c0_0] : memref<16x32xf32, #tpu.memory_space<vmem>>, vector<16x32xf32>
    %cst = arith.constant dense<0.000000e+00> : vector<16xf32>
    %1 = vector.multi_reduction <add>, %0, %cst [1] : vector<16x32xf32> to vector<16xf32>
    %2 = vector.shape_cast %1 : vector<16xf32> to vector<16x1xf32>
    %cst_1 = arith.constant 3.200000e+01 : f32
    %3 = vector.broadcast %cst_1 : f32 to vector<16x1xf32>
    %4 = arith.divf %2, %3 : vector<16x1xf32>
    %5 = vector.broadcast %4 : vector<16x1xf32> to vector<16x32xf32>
    %6 = arith.subf %0, %5 : vector<16x32xf32>
    %7 = arith.mulf %6, %6 : vector<16x32xf32>
    %cst_2 = arith.constant dense<0.000000e+00> : vector<16xf32>
    %8 = vector.multi_reduction <add>, %7, %cst_2 [1] : vector<16x32xf32> to vector<16xf32>
    %9 = vector.shape_cast %8 : vector<16xf32> to vector<16x1xf32>
    %cst_3 = arith.constant 3.200000e+01 : f32
    %10 = vector.broadcast %cst_3 : f32 to vector<16x1xf32>
    %11 = arith.divf %9, %10 : vector<16x1xf32>
    %12 = vector.broadcast %4 : vector<16x1xf32> to vector<16x32xf32>
    %13 = arith.subf %0, %12 : vector<16x32xf32>
    %cst_4 = arith.constant 9.99999974E-6 : f32
    %14 = vector.broadcast %cst_4 : f32 to vector<16x1xf32>
    %15 = arith.addf %11, %14 : vector<16x1xf32>
    %16 = math.rsqrt %15 : vector<16x1xf32>
    %17 = vector.broadcast %16 : vector<16x1xf32> to vector<16x32xf32>
    %18 = arith.mulf %13, %17 : vector<16x32xf32>
    %c0_5 = arith.constant 0 : index
    %c0_6 = arith.constant 0 : index
    %19 = vector.load %arg4[%c0_5, %c0_6] : memref<1x32xf32, #tpu.memory_space<vmem>>, vector<1x32xf32>
    %20 = vector.broadcast %19 : vector<1x32xf32> to vector<16x32xf32>
    %21 = arith.mulf %18, %20 : vector<16x32xf32>
    %c0_7 = arith.constant 0 : index
    %c0_8 = arith.constant 0 : index
    %22 = vector.load %arg5[%c0_7, %c0_8] : memref<1x32xf32, #tpu.memory_space<vmem>>, vector<1x32xf32>
    %23 = vector.broadcast %22 : vector<1x32xf32> to vector<16x32xf32>
    %24 = arith.addf %21, %23 : vector<16x32xf32>
    %25 = arith.truncf %24 : vector<16x32xf32> to vector<16x32xbf16>
    %c0_9 = arith.constant 0 : index
    %c0_10 = arith.constant 0 : index
    %26 = vector.load %arg3[%c0_9, %c0_10] : memref<32x16xbf16, #tpu.memory_space<vmem>>, vector<32x16xbf16>
    %cst_11 = arith.constant dense<0.000000e+00> : vector<16x16xf32>
    %27 = tpu.matmul %25, %26, %cst_11 {dimension_numbers = #tpu.dot_dimension_numbers<[1], [0], [0], [1], [0, 0, 1, 1], [], []>} : vector<16x32xbf16>, vector<32x16xbf16>, vector<16x16xf32> -> vector<16x16xf32>
    %c0_12 = arith.constant 0 : index
    %c0_13 = arith.constant 0 : index
    %28 = vector.load %arg6[%c0_12, %c0_13] : memref<1x16xf32, #tpu.memory_space<vmem>>, vector<1x16xf32>
    %29 = vector.broadcast %28 : vector<1x16xf32> to vector<16x16xf32>
    %30 = arith.addf %27, %29 : vector<16x16xf32>
    %cst_14 = arith.constant dense<0xFF800000> : vector<16xf32>
    %31 = vector.multi_reduction <maximumf>, %30, %cst_14 [1] : vector<16x16xf32> to vector<16xf32>
    %32 = vector.shape_cast %31 : vector<16xf32> to vector<16x1xf32>
    %33 = vector.broadcast %32 : vector<16x1xf32> to vector<16x16xf32>
    %34 = arith.subf %30, %33 : vector<16x16xf32>
    %35 = math.exp %34 : vector<16x16xf32>
    %cst_15 = arith.constant dense<0.000000e+00> : vector<16xf32>
    %36 = vector.multi_reduction <add>, %35, %cst_15 [1] : vector<16x16xf32> to vector<16xf32>
    %37 = vector.shape_cast %36 : vector<16xf32> to vector<16x1xf32>
    %38 = math.log %37 : vector<16x1xf32>
    %39 = vector.broadcast %38 : vector<16x1xf32> to vector<16x16xf32>
    %40 = arith.subf %34, %39 : vector<16x16xf32>
    %c0_16 = arith.constant 0 : index
    %c0_17 = arith.constant 0 : index
    %41 = vector.load %arg7[%c0_16, %c0_17] : memref<16x16xf32, #tpu.memory_space<vmem>>, vector<16x16xf32>
    tpu.vector_store %arg7[%c0_16, %c0_17], %40 {strides = array<i32>} : memref<16x16xf32, #tpu.memory_space<vmem>>, vector<16x16xf32>,
    return
  }
  func.func @transform_0(%arg0: i32, %arg1: i32) -> (i32, i32) {
    %c0_i32 = arith.constant 0 : i32
    %c0_i32_0 = arith.constant 0 : i32
    return %arg0, %c0_i32 : i32, i32
  }
  func.func @transform_1(%arg0: i32, %arg1: i32) -> (i32, i32) {
    %c0_i32 = arith.constant 0 : i32
    %c0_i32_0 = arith.constant 0 : i32
    return %c0_i32, %arg1 : i32, i32
  }
  func.func @transform_2(%arg0: i32, %arg1: i32) -> (i32, i32) {
    %c0_i32 = arith.constant 0 : i32
    %c0_i32_0 = arith.constant 0 : i32
    %c0_i32_1 = arith.constant 0 : i32
    return %c0_i32, %c0_i32_0 : i32, i32
  }
  func.func @transform_3(%arg0: i32, %arg1: i32) -> (i32, i32) {
    %c0_i32 = arith.constant 0 : i32
    %c0_i32_0 = arith.constant 0 : i32
    %c0_i32_1 = arith.constant 0 : i32
    return %c0_i32, %c0_i32_0 : i32, i32
  }
  func.func @transform_4(%arg0: i32, %arg1: i32) -> (i32, i32) {
    %c0_i32 = arith.constant 0 : i32
    %c0_i32_0 = arith.constant 0 : i32
    return %c0_i32, %arg1 : i32, i32
  }
  func.func @transform_5(%arg0: i32, %arg1: i32) -> (i32, i32) {
    %c0_i32 = arith.constant 0 : i32
    return %arg0, %arg1 : i32, i32
  }
}

</mosaic_0001>

<llo_original>
// kernel: transformer_forward.41
$region0: #{transformer_forward.41}
  #allocation0 [shape = 'u32[]', space=smem, size = 0x4, offset = 0x4, fixed_abs, tag = 'smem constant byte address 0x4 - core index']
  #allocation1 [shape = 'u32[144,128]{1,0:T(1,128)}', space=vmem, size = 0x12000, scoped, tag = 'internal scratch']
  %s0 = inlined_call_operand.vmem [shape: bf16[16,32], index: 0, kind: input, shape index: {}]
  %s1 = inlined_call_operand.vmem [shape: bf16[32,32], index: 1, kind: input, shape index: {}]
  %s2 = inlined_call_operand.vmem [shape: f32[16,32], index: 2, kind: input, shape index: {}]
  %s3 = inlined_call_operand.vmem [shape: f32[16,32], index: 3, kind: output, shape index: {}]
  %s4 = sld [smem:[#allocation0]]
  $region22: #{transformer_forward.41} parent=0
    _
  %s6 = ssub.s32 1, %s4
  %s7 = scalar_select 0, %s6, %s4
  // Predicated region
  $region2: #{transformer_forward.41} parent=0 // pred_check
    _
  $region3: #{transformer_forward.41} parent=0 // pred_check_branch
    %9 = sbr.rel (0) target = $region5
  $region4: #{transformer_forward.41} parent=0 // pred_region
    _
  $region5: #{transformer_forward.41} parent=0 // pred_fallthru
    _
  // Predicated region
  $region6: #{transformer_forward.41} parent=0 // pred_check
    _
  $region7: #{transformer_forward.41} parent=0 // pred_check_branch
    %11 = sbr.rel (0) target = $region9
  $region8: #{transformer_forward.41} parent=0 // pred_region
    _
  $region9: #{transformer_forward.41} parent=0 // pred_fallthru
    _
  // Predicated region
  $region10: #{transformer_forward.41} parent=0 // pred_check
    _
  $region11: #{transformer_forward.41} parent=0 // pred_check_branch
    %13 = sbr.rel (0) target = $region13
  $region12: #{transformer_forward.41} parent=0 // pred_region
    _
  $region13: #{transformer_forward.41} parent=0 // pred_fallthru
    _
  %v15 = vld [vmem:[%s0] sm:$0xf]
  %v16 = vld [vmem:[%s0 + $0x4] sm:$0xf]
  %v17 = vld [vmem:[%s1] sm:$0xf]
  %v18 = vld [vmem:[%s1 + $0x4] sm:$0xf]
  %v19 = vld [vmem:[%s1 + $0x8] sm:$0xf]
  %v20 = vld [vmem:[%s1 + $0xc] sm:$0xf]
  %v21 = vld [vmem:[%s2] sm:$0xff]
  %v22 = vld [vmem:[%s2 + $0x8] sm:$0xff]
  %v25 = vunpack.c.l.b16 %v15
  %v26 = vunpack.c.l.b16 %v16
  %v27 = vpack.c.b16 %v26, %v25
  %v32 = vunpack.c.l.b16 %v17
  %v33 = vunpack.c.l.b16 %v18
  %v34 = vunpack.c.l.b16 %v19
  %v35 = vunpack.c.l.b16 %v20
  %v36 = vpack.c.b16 %v33, %v32
  %v37 = vpack.c.b16 %v35, %v34
  %vm40 = vcmask 261120
  %v42 = vsel %vm40, %v27, 0
  %44 = vmatprep.subr.bf16.mxu0 0
  %45 = vmatpush1.bf16.msra.mxu0 %v36
  %46 = vmatprep.subr.bf16.mxu0 0
  %47 = vmatpush1.bf16.msra.mxu0 %v37
  %48 = vmatprep.subr.bf16.mxu0 0
  %49 = vmatpush1.bf16.msra.mxu0 0
  %50 = vmatprep.subr.bf16.mxu0 0
  %51 = vmatpush1.bf16.msra.mxu0 0
  %52 = vmatprep.subr.bf16.mxu0 0
  %53 = vmatpush1.bf16.msra.mxu0 0
  %54 = vmatprep.subr.bf16.mxu0 0
  %55 = vmatpush1.bf16.msra.mxu0 0
  %56 = vmatprep.subr.bf16.mxu0 0
  %57 = vmatpush1.bf16.msra.mxu0 0
  %58 = vmatprep.subr.bf16.mxu0 0
  %59 = vmatpush1.bf16.msra.mxu0 0
  %60 = vmatprep.subr.bf16.mxu0 0
  %61 = vmatpush1.bf16.msra.mxu0 0
  %62 = vmatprep.subr.bf16.mxu0 0
  %63 = vmatpush1.bf16.msra.mxu0 0
  %64 = vmatprep.subr.bf16.mxu0 0
  %65 = vmatpush1.bf16.msra.mxu0 0
  %66 = vmatprep.subr.bf16.mxu0 0
  %67 = vmatpush1.bf16.msra.mxu0 0
  %68 = vmatprep.subr.bf16.mxu0 0
  %69 = vmatpush1.bf16.msra.mxu0 0
  %70 = vmatprep.subr.bf16.mxu0 0
  %71 = vmatpush1.bf16.msra.mxu0 0
  %72 = vmatprep.subr.bf16.mxu0 0
  %73 = vmatpush1.bf16.msra.mxu0 0
  %74 = vmatprep.subr.bf16.mxu0 0
  %75 = vmatpush1.bf16.msra.mxu0 0
  %76 = vmatprep.mubr.bf16.mxu0 0
  %77 = vmatmul.mubr.bf16.gmra.mrb[0].mxu0 %v42
  %v78 = vpop.f32.mrb[0].mxu0
  %v79 = vadd.f32 %v21, %v78
  %v80 = vpop.f32.mrb[0].mxu0
  %v81 = vpop.f32.mrb[0].mxu0
  %v82 = vadd.f32 %v22, %v81
  %v83 = vpop.f32.mrb[0].mxu0
  %84 = vdwg.mxu0
  %85 = vst.msk [vmem:[%s3] sm:$0xff] %vm40, %v79
  %86 = vst.msk [vmem:[%s3 + $0x8] sm:$0xff] %vm40, %v82
  // Predicated region
  $region14: #{transformer_forward.41} parent=0 // pred_check
    _
  $region15: #{transformer_forward.41} parent=0 // pred_check_branch
    %88 = sbr.rel (0) target = $region17
  $region16: #{transformer_forward.41} parent=0 // pred_region
    _
  $region17: #{transformer_forward.41} parent=0 // pred_fallthru
    _
  // Predicated region
  $region18: #{transformer_forward.41} parent=0 // pred_check
    _
  $region19: #{transformer_forward.41} parent=0 // pred_check_branch
    %90 = sbr.rel (0) target = $region21
  $region20: #{transformer_forward.41} parent=0 // pred_region
    _
  $region21: #{transformer_forward.41} parent=0 // pred_fallthru
    _

// kernel: transformer_forward.39
$region0: #{transformer_forward.39}
  #allocation0 [shape = 'u32[]', space=smem, size = 0x4, offset = 0x4, fixed_abs, tag = 'smem constant byte address 0x4 - core index']
  #allocation1 [shape = 'u32[144,128]{1,0:T(1,128)}', space=vmem, size = 0x12000, scoped, tag = 'internal scratch']
  %s0 = inlined_call_operand.vmem [shape: f32[16,32], index: 0, kind: input, shape index: {}]
  %s1 = inlined_call_operand.vmem [shape: bf16[32,96], index: 1, kind: input, shape index: {}]
  %s2 = inlined_call_operand.vmem [shape: f32[1,32], index: 2, kind: input, shape index: {}]
  %s3 = inlined_call_operand.vmem [shape: f32[1,32], index: 3, kind: input, shape index: {}]
  %s4 = inlined_call_operand.vmem [shape: bf16[16,96], index: 4, kind: output, shape index: {}]
  %s5 = sld [smem:[#allocation0]]
  $region26: #{transformer_forward.39} parent=0
    _
  %s7 = ssub.s32 1, %s5
  %s8 = scalar_select 0, %s7, %s5
  // Predicated region
  $region2: #{transformer_forward.39} parent=0 // pred_check
    _
  $region3: #{transformer_forward.39} parent=0 // pred_check_branch
    %10 = sbr.rel (0) target = $region5
  $region4: #{transformer_forward.39} parent=0 // pred_region
    _
  $region5: #{transformer_forward.39} parent=0 // pred_fallthru
    _
  // Predicated region
  $region6: #{transformer_forward.39} parent=0 // pred_check
    _
  $region7: #{transformer_forward.39} parent=0 // pred_check_branch
    %12 = sbr.rel (0) target = $region9
  $region8: #{transformer_forward.39} parent=0 // pred_region
    _
  $region9: #{transformer_forward.39} parent=0 // pred_fallthru
    _
  // Predicated region
  $region10: #{transformer_forward.39} parent=0 // pred_check
    _
  $region11: #{transformer_forward.39} parent=0 // pred_check_branch
    %14 = sbr.rel (0) target = $region13
  $region12: #{transformer_forward.39} parent=0 // pred_region
    _
  $region13: #{transformer_forward.39} parent=0 // pred_fallthru
    _
  // Predicated region
  $region14: #{transformer_forward.39} parent=0 // pred_check
    _
  $region15: #{transformer_forward.39} parent=0 // pred_check_branch
    %16 = sbr.rel (0) target = $region17
  $region16: #{transformer_forward.39} parent=0 // pred_region
    _
  $region17: #{transformer_forward.39} parent=0 // pred_fallthru
    _
  %v18 = vld [vmem:[%s0] sm:$0xff]
  %v19 = vld [vmem:[%s0 + $0x8] sm:$0xff]
  %vm20 = vcmask 261120
  %v21 = vsel %vm20, %v18, 0.0
  %22 = vadd.xlane.f32.xlu0 %v21
  %v23 = vpop.xlane.xlu0 %22
  %v24 = vsel %vm20, %v19, 0.0
  %25 = vadd.xlane.f32.xlu0 %v24
  %v26 = vpop.xlane.xlu0 %25
  %v27 = vrcp.pop 32.0
  %v28 = vmul.f32 %v23, %v27
  %v29 = vmul.f32 %v26, %v27
  %v30 = vsub.f32 %v18, %v28
  %v31 = vsub.f32 %v19, %v29
  %v32 = vmul.f32 %v30, %v30
  %v33 = vmul.f32 %v31, %v31
  %v34 = vsel %vm20, %v32, 0.0
  %35 = vadd.xlane.f32.xlu0 %v34
  %v36 = vpop.xlane.xlu0 %35
  %v37 = vsel %vm20, %v33, 0.0
  %38 = vadd.xlane.f32.xlu0 %v37
  %v39 = vpop.xlane.xlu0 %38
  %v40 = vmul.f32 %v36, %v27
  %v41 = vmul.f32 %v39, %v27
  %v42 = vadd.f32 %v40, 1e-05
  %v43 = vadd.f32 %v41, 1e-05
  %v44 = vrsqrt.pop %v42
  %v45 = vrsqrt.pop %v43
  %v46 = vmul.f32 %v30, %v44
  %v47 = vmul.f32 %v31, %v45
  %v48 = vld [vmem:[%s2] sm:$0x1]
  %v50 = vlaneseq
  %v51 = vshrl.u32 %v50, 7
  %v52 = vsub.s32 0, %v51
  %v53 = vrot.slane %v48, %v52
  %v55 = vmul.f32 %v46, %v53
  %v56 = vmul.f32 %v47, %v53
  %v57 = vld [vmem:[%s3] sm:$0x1]
  %v59 = vlaneseq
  %v60 = vshrl.u32 %v59, 7
  %v61 = vsub.s32 0, %v60
  %v62 = vrot.slane %v57, %v61
  %v64 = vadd.f32 %v55, %v62
  %v65 = vadd.f32 %v56, %v62
  %v66 = vpack.c.bf16 %v65, %v64
  %v67 = vld [vmem:[%s1] sm:$0xf]
  %v68 = vld [vmem:[%s1 + $0x4] sm:$0xf]
  %v69 = vld [vmem:[%s1 + $0x8] sm:$0xf]
  %v70 = vld [vmem:[%s1 + $0xc] sm:$0xf]
  %v75 = vunpack.c.l.b16 %v67
  %v76 = vunpack.c.l.b16 %v68
  %v77 = vunpack.c.l.b16 %v69
  %v78 = vunpack.c.l.b16 %v70
  %v79 = vpack.c.b16 %v76, %v75
  %v80 = vpack.c.b16 %v78, %v77
  %v84 = vsel %vm20, %v66, 0
  %86 = vmatprep.subr.bf16.mxu0 0
  %87 = vmatpush1.bf16.msra.mxu0 %v79
  %88 = vmatprep.subr.bf16.mxu0 0
  %89 = vmatpush1.bf16.msra.mxu0 %v80
  %90 = vmatprep.subr.bf16.mxu0 0
  %91 = vmatpush1.bf16.msra.mxu0 0
  %92 = vmatprep.subr.bf16.mxu0 0
  %93 = vmatpush1.bf16.msra.mxu0 0
  %94 = vmatprep.subr.bf16.mxu0 0
  %95 = vmatpush1.bf16.msra.mxu0 0
  %96 = vmatprep.subr.bf16.mxu0 0
  %97 = vmatpush1.bf16.msra.mxu0 0
  %98 = vmatprep.subr.bf16.mxu0 0
  %99 = vmatpush1.bf16.msra.mxu0 0
  %100 = vmatprep.subr.bf16.mxu0 0
  %101 = vmatpush1.bf16.msra.mxu0 0
  %102 = vmatprep.subr.bf16.mxu0 0
  %103 = vmatpush1.bf16.msra.mxu0 0
  %104 = vmatprep.subr.bf16.mxu0 0
  %105 = vmatpush1.bf16.msra.mxu0 0
  %106 = vmatprep.subr.bf16.mxu0 0
  %107 = vmatpush1.bf16.msra.mxu0 0
  %108 = vmatprep.subr.bf16.mxu0 0
  %109 = vmatpush1.bf16.msra.mxu0 0
  %110 = vmatprep.subr.bf16.mxu0 0
  %111 = vmatpush1.bf16.msra.mxu0 0
  %112 = vmatprep.subr.bf16.mxu0 0
  %113 = vmatpush1.bf16.msra.mxu0 0
  %114 = vmatprep.subr.bf16.mxu0 0
  %115 = vmatpush1.bf16.msra.mxu0 0
  %116 = vmatprep.subr.bf16.mxu0 0
  %117 = vmatpush1.bf16.msra.mxu0 0
  %118 = vmatprep.mubr.bf16.mxu0 0
  %119 = vmatmul.mubr.bf16.gmra.mrb[0].mxu0 %v84
  %v120 = vpop.f32.mrb[0].mxu0
  %v121 = vadd.f32 0.0, %v120
  %v122 = vpop.f32.mrb[0].mxu0
  %v123 = vpop.f32.mrb[0].mxu0
  %v124 = vadd.f32 0.0, %v123
  %v125 = vpop.f32.mrb[0].mxu0
  %126 = vdwg.mxu0
  %v127 = vpack.c.bf16 %v124, %v121
  %v129 = vunpack.c.l.b16 %v127
  %v130 = vunpack.c.h.b16 %v127
  %v131 = vpack.c.b16 %v129, %v129
  %v132 = vpack.c.b16 %v130, %v130
  %vm135 = vcmask 781312
  %136 = vst.msk [vmem:[%s4] sm:$0xf] %vm135, %v131
  %137 = vst.msk [vmem:[%s4 + $0x4] sm:$0xf] %vm135, %v132
  // Predicated region
  $region18: #{transformer_forward.39} parent=0 // pred_check
    _
  $region19: #{transformer_forward.39} parent=0 // pred_check_branch
    %139 = sbr.rel (0) target = $region21
  $region20: #{transformer_forward.39} parent=0 // pred_region
    _
  $region21: #{transformer_forward.39} parent=0 // pred_fallthru
    _
  // Predicated region
  $region22: #{transformer_forward.39} parent=0 // pred_check
    _
  $region23: #{transformer_forward.39} parent=0 // pred_check_branch
    %141 = sbr.rel (0) target = $region25
  $region24: #{transformer_forward.39} parent=0 // pred_region
    _
  $region25: #{transformer_forward.39} parent=0 // pred_fallthru
    _

// kernel: transformer_forward.42
$region0: #{transformer_forward.42}
  #allocation0 [shape = 'u32[]', space=smem, size = 0x4, offset = 0x4, fixed_abs, tag = 'smem constant byte address 0x4 - core index']
  #allocation1 [shape = 'u32[144,128]{1,0:T(1,128)}', space=vmem, size = 0x12000, scoped, tag = 'internal scratch']
  %s0 = inlined_call_operand.vmem [shape: f32[16,32], index: 0, kind: input, shape index: {}]
  %s1 = inlined_call_operand.vmem [shape: bf16[32,32], index: 1, kind: input, shape index: {}]
  %s2 = inlined_call_operand.vmem [shape: f32[1,32], index: 2, kind: input, shape index: {}]
  %s3 = inlined_call_operand.vmem [shape: f32[1,32], index: 3, kind: input, shape index: {}]
  %s4 = inlined_call_operand.vmem [shape: bf16[16,32], index: 4, kind: output, shape index: {}]
  %s5 = sld [smem:[#allocation0]]
  $region26: #{transformer_forward.42} parent=0
    _
  %s7 = ssub.s32 1, %s5
  %s8 = scalar_select 0, %s7, %s5
  // Predicated region
  $region2: #{transformer_forward.42} parent=0 // pred_check
    _
  $region3: #{transformer_forward.42} parent=0 // pred_check_branch
    %10 = sbr.rel (0) target = $region5
  $region4: #{transformer_forward.42} parent=0 // pred_region
    _
  $region5: #{transformer_forward.42} parent=0 // pred_fallthru
    _
  // Predicated region
  $region6: #{transformer_forward.42} parent=0 // pred_check
    _
  $region7: #{transformer_forward.42} parent=0 // pred_check_branch
    %12 = sbr.rel (0) target = $region9
  $region8: #{transformer_forward.42} parent=0 // pred_region
    _
  $region9: #{transformer_forward.42} parent=0 // pred_fallthru
    _
  // Predicated region
  $region10: #{transformer_forward.42} parent=0 // pred_check
    _
  $region11: #{transformer_forward.42} parent=0 // pred_check_branch
    %14 = sbr.rel (0) target = $region13
  $region12: #{transformer_forward.42} parent=0 // pred_region
    _
  $region13: #{transformer_forward.42} parent=0 // pred_fallthru
    _
  // Predicated region
  $region14: #{transformer_forward.42} parent=0 // pred_check
    _
  $region15: #{transformer_forward.42} parent=0 // pred_check_branch
    %16 = sbr.rel (0) target = $region17
  $region16: #{transformer_forward.42} parent=0 // pred_region
    _
  $region17: #{transformer_forward.42} parent=0 // pred_fallthru
    _
  %v18 = vld [vmem:[%s0] sm:$0xff]
  %v19 = vld [vmem:[%s0 + $0x8] sm:$0xff]
  %vm20 = vcmask 261120
  %v21 = vsel %vm20, %v18, 0.0
  %22 = vadd.xlane.f32.xlu0 %v21
  %v23 = vpop.xlane.xlu0 %22
  %v24 = vsel %vm20, %v19, 0.0
  %25 = vadd.xlane.f32.xlu0 %v24
  %v26 = vpop.xlane.xlu0 %25
  %v27 = vrcp.pop 32.0
  %v28 = vmul.f32 %v23, %v27
  %v29 = vmul.f32 %v26, %v27
  %v30 = vsub.f32 %v18, %v28
  %v31 = vsub.f32 %v19, %v29
  %v32 = vmul.f32 %v30, %v30
  %v33 = vmul.f32 %v31, %v31
  %v34 = vsel %vm20, %v32, 0.0
  %35 = vadd.xlane.f32.xlu0 %v34
  %v36 = vpop.xlane.xlu0 %35
  %v37 = vsel %vm20, %v33, 0.0
  %38 = vadd.xlane.f32.xlu0 %v37
  %v39 = vpop.xlane.xlu0 %38
  %v40 = vmul.f32 %v36, %v27
  %v41 = vmul.f32 %v39, %v27
  %v42 = vadd.f32 %v40, 1e-05
  %v43 = vadd.f32 %v41, 1e-05
  %v44 = vrsqrt.pop %v42
  %v45 = vrsqrt.pop %v43
  %v46 = vmul.f32 %v30, %v44
  %v47 = vmul.f32 %v31, %v45
  %v48 = vld [vmem:[%s2] sm:$0x1]
  %v50 = vlaneseq
  %v51 = vshrl.u32 %v50, 7
  %v52 = vsub.s32 0, %v51
  %v53 = vrot.slane %v48, %v52
  %v55 = vmul.f32 %v46, %v53
  %v56 = vmul.f32 %v47, %v53
  %v57 = vld [vmem:[%s3] sm:$0x1]
  %v59 = vlaneseq
  %v60 = vshrl.u32 %v59, 7
  %v61 = vsub.s32 0, %v60
  %v62 = vrot.slane %v57, %v61
  %v64 = vadd.f32 %v55, %v62
  %v65 = vadd.f32 %v56, %v62
  %v66 = vpack.c.bf16 %v65, %v64
  %v67 = vld [vmem:[%s1] sm:$0xf]
  %v68 = vld [vmem:[%s1 + $0x4] sm:$0xf]
  %v69 = vld [vmem:[%s1 + $0x8] sm:$0xf]
  %v70 = vld [vmem:[%s1 + $0xc] sm:$0xf]
  %v75 = vunpack.c.l.b16 %v67
  %v76 = vunpack.c.l.b16 %v68
  %v77 = vunpack.c.l.b16 %v69
  %v78 = vunpack.c.l.b16 %v70
  %v79 = vpack.c.b16 %v76, %v75
  %v80 = vpack.c.b16 %v78, %v77
  %v84 = vsel %vm20, %v66, 0
  %86 = vmatprep.subr.bf16.mxu0 0
  %87 = vmatpush1.bf16.msra.mxu0 %v79
  %88 = vmatprep.subr.bf16.mxu0 0
  %89 = vmatpush1.bf16.msra.mxu0 %v80
  %90 = vmatprep.subr.bf16.mxu0 0
  %91 = vmatpush1.bf16.msra.mxu0 0
  %92 = vmatprep.subr.bf16.mxu0 0
  %93 = vmatpush1.bf16.msra.mxu0 0
  %94 = vmatprep.subr.bf16.mxu0 0
  %95 = vmatpush1.bf16.msra.mxu0 0
  %96 = vmatprep.subr.bf16.mxu0 0
  %97 = vmatpush1.bf16.msra.mxu0 0
  %98 = vmatprep.subr.bf16.mxu0 0
  %99 = vmatpush1.bf16.msra.mxu0 0
  %100 = vmatprep.subr.bf16.mxu0 0
  %101 = vmatpush1.bf16.msra.mxu0 0
  %102 = vmatprep.subr.bf16.mxu0 0
  %103 = vmatpush1.bf16.msra.mxu0 0
  %104 = vmatprep.subr.bf16.mxu0 0
  %105 = vmatpush1.bf16.msra.mxu0 0
  %106 = vmatprep.subr.bf16.mxu0 0
  %107 = vmatpush1.bf16.msra.mxu0 0
  %108 = vmatprep.subr.bf16.mxu0 0
  %109 = vmatpush1.bf16.msra.mxu0 0
  %110 = vmatprep.subr.bf16.mxu0 0
  %111 = vmatpush1.bf16.msra.mxu0 0
  %112 = vmatprep.subr.bf16.mxu0 0
  %113 = vmatpush1.bf16.msra.mxu0 0
  %114 = vmatprep.subr.bf16.mxu0 0
  %115 = vmatpush1.bf16.msra.mxu0 0
  %116 = vmatprep.subr.bf16.mxu0 0
  %117 = vmatpush1.bf16.msra.mxu0 0
  %118 = vmatprep.mubr.bf16.mxu0 0
  %119 = vmatmul.mubr.bf16.gmra.mrb[0].mxu0 %v84
  %v120 = vpop.f32.mrb[0].mxu0
  %v121 = vadd.f32 0.0, %v120
  %v122 = vpop.f32.mrb[0].mxu0
  %v123 = vpop.f32.mrb[0].mxu0
  %v124 = vadd.f32 0.0, %v123
  %v125 = vpop.f32.mrb[0].mxu0
  %126 = vdwg.mxu0
  %v127 = vpack.c.bf16 %v124, %v121
  %v129 = vunpack.c.l.b16 %v127
  %v130 = vunpack.c.h.b16 %v127
  %v131 = vpack.c.b16 %v129, %v129
  %v132 = vpack.c.b16 %v130, %v130
  %vm135 = vcmask 257024
  %136 = vst.msk [vmem:[%s4] sm:$0xf] %vm135, %v131
  %137 = vst.msk [vmem:[%s4 + $0x4] sm:$0xf] %vm135, %v132
  // Predicated region
  $region18: #{transformer_forward.42} parent=0 // pred_check
    _
  $region19: #{transformer_forward.42} parent=0 // pred_check_branch
    %139 = sbr.rel (0) target = $region21
  $region20: #{transformer_forward.42} parent=0 // pred_region
    _
  $region21: #{transformer_forward.42} parent=0 // pred_fallthru
    _
  // Predicated region
  $region22: #{transformer_forward.42} parent=0 // pred_check
    _
  $region23: #{transformer_forward.42} parent=0 // pred_check_branch
    %141 = sbr.rel (0) target = $region25
  $region24: #{transformer_forward.42} parent=0 // pred_region
    _
  $region25: #{transformer_forward.42} parent=0 // pred_fallthru
    _

// kernel: transformer_forward.40
$region0: #{transformer_forward.40}
  #allocation0 [shape = 'u32[]', space=smem, size = 0x4, offset = 0x4, fixed_abs, tag = 'smem constant byte address 0x4 - core index']
  #allocation1 [shape = 'u32[144,128]{1,0:T(1,128)}', space=vmem, size = 0x12000, scoped, tag = 'internal scratch']
  %s0 = inlined_call_operand.vmem [shape: bf16[2,4,8,8], index: 0, kind: input, shape index: {}]
  %s1 = inlined_call_operand.vmem [shape: bf16[2,4,8,8], index: 1, kind: input, shape index: {}]
  %s2 = inlined_call_operand.vmem [shape: bf16[2,4,8,8], index: 2, kind: input, shape index: {}]
  %s3 = inlined_call_operand.vmem [shape: f32[2,8,8], index: 3, kind: input, shape index: {}]
  %s4 = inlined_call_operand.vmem [shape: bf16[2,4,8,8], index: 4, kind: output, shape index: {}]
  %s5 = sld [smem:[#allocation0]]
  $region49: #{transformer_forward.40} parent=0
    _
  %s7 = ssub.s32 1, %s5
  %s8 = scalar_select 0, %s7, %s5
  loop: start=0, step=1, limit=4
  $region2: #{transformer_forward.40} parent=0 // loop_pre_header
    _
  $region3: #{transformer_forward.40} parent=0 // loop_header
    %s10 = sphi 0, %s14
    %p11 = scmp.ge.s32.totalorder %s10, 4
    %s20 = sphi 0, %s22
    %s23 = sphi 0, %s20
    %s24 = sphi 0, %s23
    %s40 = sphi 0, %s24
    %s46 = sphi 0, %s48
    %s49 = sphi 0, %s46
    %s50 = sphi 0, %s49
    %s66 = sphi 0, %s50
    %s72 = sphi 0, %s74
    %s75 = sphi 0, %s72
    %s76 = sphi 0, %s75
    %s92 = sphi 0, %s76
    %s98 = sphi 0, %s100
    %s101 = sphi 0, %s98
    %s102 = sphi 0, %s101
    %s118 = sphi 0, %s102
    %s124 = sphi 0, %s126
    %s127 = sphi 0, %s124
    %s128 = sphi 0, %s127
    %s144 = sphi 0, %s128
  $region4: #{transformer_forward.40} parent=0 // loop_header_branch
    %13 = sbr.rel (%p11) target = $region8
  $region5: #{transformer_forward.40} parent=0 // loop_body
    %s15 = ssub.s32 %s10, 1
    %s16 = ssub.s32 %s10, 2
    %s17 = sadd.s32 %s10, 1
    %s18 = ssub.s32 %s10, %s17
    %p19 = scmp.eq.s32.totalorder %s18, 0
    %s21 = sadd.s32 %s20, 1
    %s22 = scalar_select %p19, %s20, %s21
    %p25 = pneg %p19
    %p26 = scmp.eq.s32.totalorder %s10, 1
    %p27 = por %p25, %p26
    %p28 = scmp.ne.s32.totalorder %s20, %s23
    %p29 = scmp.eq.s32.totalorder %s10, 0
    %p30 = por %p28, %p29
    %p31 = scmp.ne.s32.totalorder %s20, %s23
    %p32 = scmp.eq.s32.totalorder %s15, 1
    %p33 = por %p31, %p32
    %p34 = scmp.ne.s32.totalorder %s23, %s24
    %p35 = scmp.eq.s32.totalorder %s15, 0
    %p36 = por %p34, %p35
    %p37 = scmp.ne.s32.totalorder %s23, %s24
    %p38 = scmp.eq.s32.totalorder %s16, 1
    %p39 = por %p37, %p38
    %p41 = scmp.ne.s32.totalorder %s24, %s40
    %p42 = scmp.eq.s32.totalorder %s16, 0
    %p43 = por %p41, %p42
    %s44 = ssub.s32 %s10, %s17
    %p45 = scmp.eq.s32.totalorder %s44, 0
    %s47 = sadd.s32 %s46, 1
    %s48 = scalar_select %p45, %s46, %s47
    %p51 = pneg %p45
    %p52 = scmp.eq.s32.totalorder %s10, 1
    %p53 = por %p51, %p52
    %p54 = scmp.ne.s32.totalorder %s46, %s49
    %p55 = scmp.eq.s32.totalorder %s10, 0
    %p56 = por %p54, %p55
    %p57 = scmp.ne.s32.totalorder %s46, %s49
    %p58 = scmp.eq.s32.totalorder %s15, 1
    %p59 = por %p57, %p58
    %p60 = scmp.ne.s32.totalorder %s49, %s50
    %p61 = scmp.eq.s32.totalorder %s15, 0
    %p62 = por %p60, %p61
    %p63 = scmp.ne.s32.totalorder %s49, %s50
    %p64 = scmp.eq.s32.totalorder %s16, 1
    %p65 = por %p63, %p64
    %p67 = scmp.ne.s32.totalorder %s50, %s66
    %p68 = scmp.eq.s32.totalorder %s16, 0
    %p69 = por %p67, %p68
    %s70 = ssub.s32 %s10, %s17
    %p71 = scmp.eq.s32.totalorder %s70, 0
    %s73 = sadd.s32 %s72, 1
    %s74 = scalar_select %p71, %s72, %s73
    %p77 = pneg %p71
    %p78 = scmp.eq.s32.totalorder %s10, 1
    %p79 = por %p77, %p78
    %p80 = scmp.ne.s32.totalorder %s72, %s75
    %p81 = scmp.eq.s32.totalorder %s10, 0
    %p82 = por %p80, %p81
    %p83 = scmp.ne.s32.totalorder %s72, %s75
    %p84 = scmp.eq.s32.totalorder %s15, 1
    %p85 = por %p83, %p84
    %p86 = scmp.ne.s32.totalorder %s75, %s76
    %p87 = scmp.eq.s32.totalorder %s15, 0
    %p88 = por %p86, %p87
    %p89 = scmp.ne.s32.totalorder %s75, %s76
    %p90 = scmp.eq.s32.totalorder %s16, 1
    %p91 = por %p89, %p90
    %p93 = scmp.ne.s32.totalorder %s76, %s92
    %p94 = scmp.eq.s32.totalorder %s16, 0
    %p95 = por %p93, %p94
    %s96 = ssub.s32 %s10, %s17
    %p97 = scmp.eq.s32.totalorder %s96, 0
    %s99 = sadd.s32 %s98, 1
    %s100 = scalar_select %p97, %s98, %s99
    %p103 = pneg %p97
    %p104 = scmp.eq.s32.totalorder %s10, 1
    %p105 = por %p103, %p104
    %p106 = scmp.ne.s32.totalorder %s98, %s101
    %p107 = scmp.eq.s32.totalorder %s10, 0
    %p108 = por %p106, %p107
    %p109 = scmp.ne.s32.totalorder %s98, %s101
    %p110 = scmp.eq.s32.totalorder %s15, 1
    %p111 = por %p109, %p110
    %p112 = scmp.ne.s32.totalorder %s101, %s102
    %p113 = scmp.eq.s32.totalorder %s15, 0
    %p114 = por %p112, %p113
    %p115 = scmp.ne.s32.totalorder %s101, %s102
    %p116 = scmp.eq.s32.totalorder %s16, 1
    %p117 = por %p115, %p116
    %p119 = scmp.ne.s32.totalorder %s102, %s118
    %p120 = scmp.eq.s32.totalorder %s16, 0
    %p121 = por %p119, %p120
    %s122 = ssub.s32 %s10, %s17
    %p123 = scmp.eq.s32.totalorder %s122, 0
    %s125 = sadd.s32 %s124, 1
    %s126 = scalar_select %p123, %s124, %s125
    %p129 = pneg %p123
    %p130 = scmp.eq.s32.totalorder %s10, 1
    %p131 = por %p129, %p130
    %p132 = scmp.ne.s32.totalorder %s124, %s127
    %p133 = scmp.eq.s32.totalorder %s10, 0
    %p134 = por %p132, %p133
    %p135 = scmp.ne.s32.totalorder %s124, %s127
    %p136 = scmp.eq.s32.totalorder %s15, 1
    %p137 = por %p135, %p136
    %p138 = scmp.ne.s32.totalorder %s127, %s128
    %p139 = scmp.eq.s32.totalorder %s15, 0
    %p140 = por %p138, %p139
    %p141 = scmp.ne.s32.totalorder %s127, %s128
    %p142 = scmp.eq.s32.totalorder %s16, 1
    %p143 = por %p141, %p142
    %p145 = scmp.ne.s32.totalorder %s128, %s144
    %p146 = scmp.eq.s32.totalorder %s16, 0
    %p147 = por %p145, %p146
    %p148 = scmp.le.s32.totalorder 1, %s10
    %p149 = scmp.lt.s32.totalorder %s10, 3
    %p150 = pnand %p148, %p149
    %p151 = pneg %p150
    // Predicated region
    $region9: #{transformer_forward.40} parent=5 // pred_check
      _
    $region10: #{transformer_forward.40} parent=5 // pred_check_branch
      %153 = sbr.rel (%p150) target = $region12
    $region11: #{transformer_forward.40} parent=5 // pred_region
      %s154 = ssub.s32 %s10, 1
    $region12: #{transformer_forward.40} parent=5 // pred_fallthru
      _
    %p155 = scmp.lt.s32.totalorder %s10, 2
    // Predicated region
    $region13: #{transformer_forward.40} parent=5 // pred_check
      %p156 = pneg %p155
    $region14: #{transformer_forward.40} parent=5 // pred_check_branch
      %158 = sbr.rel (%p156) target = $region16
    $region15: #{transformer_forward.40} parent=5 // pred_region
      // Predicated region
      $region17: #{transformer_forward.40} parent=15 // pred_check
        %p159 = pneg %p30
      $region18: #{transformer_forward.40} parent=15 // pred_check_branch
        %161 = sbr.rel (%p159) target = $region20
      $region19: #{transformer_forward.40} parent=15 // pred_region
        %p162 = scmp.lt.s32.totalorder %s10, 1
        %s163 = scalar_select %p162, %s10, 1
        %s164 = smul.addr %s163, 4
        %s165 = smul.addr %s164, 4
        %s166 = scalar_lea.vmem %s0, %s165
      $region20: #{transformer_forward.40} parent=15 // pred_fallthru
        _
      // Predicated region
      $region21: #{transformer_forward.40} parent=15 // pred_check
        %p167 = pneg %p56
      $region22: #{transformer_forward.40} parent=15 // pred_check_branch
        %169 = sbr.rel (%p167) target = $region24
      $region23: #{transformer_forward.40} parent=15 // pred_region
        %p170 = scmp.lt.s32.totalorder %s10, 1
        %s171 = scalar_select %p170, %s10, 1
        %s172 = smul.addr %s171, 4
        %s173 = smul.addr %s172, 4
        %s174 = scalar_lea.vmem %s1, %s173
      $region24: #{transformer_forward.40} parent=15 // pred_fallthru
        _
      // Predicated region
      $region25: #{transformer_forward.40} parent=15 // pred_check
        %p175 = pneg %p82
      $region26: #{transformer_forward.40} parent=15 // pred_check_branch
        %177 = sbr.rel (%p175) target = $region28
      $region27: #{transformer_forward.40} parent=15 // pred_region
        %p178 = scmp.lt.s32.totalorder %s10, 1
        %s179 = scalar_select %p178, %s10, 1
        %s180 = smul.addr %s179, 4
        %s181 = smul.addr %s180, 4
        %s182 = scalar_lea.vmem %s2, %s181
      $region28: #{transformer_forward.40} parent=15 // pred_fallthru
        _
      // Predicated region
      $region29: #{transformer_forward.40} parent=15 // pred_check
        %p183 = pneg %p108
      $region30: #{transformer_forward.40} parent=15 // pred_check_branch
        %185 = sbr.rel (%p183) target = $region32
      $region31: #{transformer_forward.40} parent=15 // pred_region
        %p186 = scmp.lt.s32.totalorder %s10, 1
        %s187 = scalar_select %p186, %s10, 1
        %s188 = smul.addr %s187, 8
        %s189 = scalar_lea.vmem %s3, %s188
      $region32: #{transformer_forward.40} parent=15 // pred_fallthru
        _
    $region16: #{transformer_forward.40} parent=5 // pred_fallthru
      _
    %p190 = scmp.le.s32.totalorder 1, %s10
    %p191 = scmp.lt.s32.totalorder %s10, 3
    %p192 = pnand %p190, %p191
    %p193 = pneg %p192
    // Predicated region
    $region33: #{transformer_forward.40} parent=5 // pred_check
      _
    $region34: #{transformer_forward.40} parent=5 // pred_check_branch
      %195 = sbr.rel (%p192) target = $region36
    $region35: #{transformer_forward.40} parent=5 // pred_region
      %s196 = ssub.s32 %s10, 1
      %p197 = scmp.lt.s32.totalorder %s15, 1
      %s198 = scalar_select %p197, %s15, 1
      %s199 = smul.addr %s198, 4
      %s200 = smul.addr %s199, 4
      %s201 = scalar_lea.vmem %s0, %s200
      %p202 = pneg %p36
      %p203 = pneg %p33
      %p204 = scmp.lt.s32.totalorder %s15, 1
      %s205 = scalar_select %p204, %s15, 1
      %s206 = smul.addr %s205, 4
      %s207 = smul.addr %s206, 4
      %s208 = scalar_lea.vmem %s1, %s207
      %p209 = pneg %p62
      %p210 = pneg %p59
      %p211 = scmp.lt.s32.totalorder %s15, 1
      %s212 = scalar_select %p211, %s15, 1
      %s213 = smul.addr %s212, 4
      %s214 = smul.addr %s213, 4
      %s215 = scalar_lea.vmem %s2, %s214
      %p216 = pneg %p88
      %p217 = pneg %p85
      %p218 = scmp.lt.s32.totalorder %s15, 1
      %s219 = scalar_select %p218, %s15, 1
      %s220 = smul.addr %s219, 8
      %s221 = scalar_lea.vmem %s3, %s220
      %p222 = pneg %p114
      %p223 = pneg %p111
      %p224 = pneg %p140
      %p225 = pneg %p137
      %p226 = scmp.lt.s32.totalorder %s15, 1
      %s227 = scalar_select %p226, %s15, 1
      %s228 = smul.addr %s227, 4
      %s229 = smul.addr %s228, 4
      %s230 = scalar_lea.vmem %s4, %s229
      %p231 = scmp.lt.s32.totalorder %s15, 1
      %s232 = scalar_select %p231, %s15, 1
      %s233 = smul.addr %s232, 4
      %s234 = smul.addr %s233, 4
      %s235 = scalar_lea.vmem %s0, %s234
      %p236 = scmp.lt.s32.totalorder %s15, 1
      %s237 = scalar_select %p236, %s15, 1
      %s238 = smul.addr %s237, 4
      %s239 = smul.addr %s238, 4
      %s240 = scalar_lea.vmem %s1, %s239
      %p241 = scmp.lt.s32.totalorder %s15, 1
      %s242 = scalar_select %p241, %s15, 1
      %s243 = smul.addr %s242, 4
      %s244 = smul.addr %s243, 4
      %s245 = scalar_lea.vmem %s2, %s244
      %p246 = scmp.lt.s32.totalorder %s15, 1
      %s247 = scalar_select %p246, %s15, 1
      %s248 = smul.addr %s247, 8
      %s249 = scalar_lea.vmem %s3, %s248
      %p250 = scmp.lt.s32.totalorder %s15, 1
      %s251 = scalar_select %p250, %s15, 1
      %s252 = smul.addr %s251, 4
      %s253 = smul.addr %s252, 4
      %s254 = scalar_lea.vmem %s4, %s253
      %v256 = vld [vmem:[%s235] sm:$0xf]
      %v257 = vld [vmem:[%s235 + $0x4] sm:$0xf]
      %v258 = vld [vmem:[%s235 + $0x8] sm:$0xf]
      %v259 = vld [vmem:[%s235 + $0xc] sm:$0xf]
      %v260 = vld [vmem:[%s240] sm:$0xf]
      %v261 = vld [vmem:[%s240 + $0x4] sm:$0xf]
      %v262 = vld [vmem:[%s240 + $0x8] sm:$0xf]
      %v263 = vld [vmem:[%s240 + $0xc] sm:$0xf]
      %v264 = vld [vmem:[%s245] sm:$0xf]
      %v265 = vld [vmem:[%s245 + $0x4] sm:$0xf]
      %v266 = vld [vmem:[%s245 + $0x8] sm:$0xf]
      %v267 = vld [vmem:[%s245 + $0xc] sm:$0xf]
      %v268 = vld [vmem:[%s249] sm:$0xff]
      %v269 = vmul.f32 %v268, -1e+30
      %vm270 = vcmask 64512
      %v272 = vsel %vm270, %v256, 0
      %v275 = vsel %vm270, %v260, 0
      %277 = vmatprep.subr.bf16.mxu0 0
      %278 = vmatpush1.bf16.xpose.msra.mxu0 %v275
      %279 = vmatprep.subr.bf16.mxu0 0
      %280 = vmatpush1.bf16.xpose.msra.mxu0 0
      %281 = vmatprep.subr.bf16.mxu0 0
      %282 = vmatpush1.bf16.xpose.msra.mxu0 0
      %283 = vmatprep.subr.bf16.mxu0 0
      %284 = vmatpush1.bf16.xpose.msra.mxu0 0
      %285 = vmatprep.subr.bf16.mxu0 0
      %286 = vmatpush1.bf16.xpose.msra.mxu0 0
      %287 = vmatprep.subr.bf16.mxu0 0
      %288 = vmatpush1.bf16.xpose.msra.mxu0 0
      %289 = vmatprep.subr.bf16.mxu0 0
      %290 = vmatpush1.bf16.xpose.msra.mxu0 0
      %291 = vmatprep.subr.bf16.mxu0 0
      %292 = vmatpush1.bf16.xpose.msra.mxu0 0
      %293 = vmatprep.subr.bf16.mxu0 0
      %294 = vmatpush1.bf16.xpose.msra.mxu0 0
      %295 = vmatprep.subr.bf16.mxu0 0
      %296 = vmatpush1.bf16.xpose.msra.mxu0 0
      %297 = vmatprep.subr.bf16.mxu0 0
      %298 = vmatpush1.bf16.xpose.msra.mxu0 0
      %299 = vmatprep.subr.bf16.mxu0 0
      %300 = vmatpush1.bf16.xpose.msra.mxu0 0
      %301 = vmatprep.subr.bf16.mxu0 0
      %302 = vmatpush1.bf16.xpose.msra.mxu0 0
      %303 = vmatprep.subr.bf16.mxu0 0
      %304 = vmatpush1.bf16.xpose.msra.mxu0 0
      %305 = vmatprep.subr.bf16.mxu0 0
      %306 = vmatpush1.bf16.xpose.msra.mxu0 0
      %307 = vmatprep.subr.bf16.mxu0 0
      %308 = vmatpush1.bf16.xpose.msra.mxu0 0
      %309 = vmatprep.mubr.bf16.mxu0 0
      %310 = vmatmul.mubr.bf16.gmra.mrb[0].mxu0 %v272
      %v311 = vpop.f32.mrb[0].mxu0
      %v312 = vadd.f32 0.0, %v311
      %v313 = vpop.f32.mrb[0].mxu0
      %v314 = vpop.f32.mrb[0].mxu0
      %v315 = vpop.f32.mrb[0].mxu0
      %316 = vdwg.mxu0
      %v318 = vsel %vm270, %v257, 0
      %v321 = vsel %vm270, %v261, 0
      %323 = vmatprep.subr.bf16.mxu0 0
      %324 = vmatpush1.bf16.xpose.msra.mxu0 %v321
      %325 = vmatprep.subr.bf16.mxu0 0
      %326 = vmatpush1.bf16.xpose.msra.mxu0 0
      %327 = vmatprep.subr.bf16.mxu0 0
      %328 = vmatpush1.bf16.xpose.msra.mxu0 0
      %329 = vmatprep.subr.bf16.mxu0 0
      %330 = vmatpush1.bf16.xpose.msra.mxu0 0
      %331 = vmatprep.subr.bf16.mxu0 0
      %332 = vmatpush1.bf16.xpose.msra.mxu0 0
      %333 = vmatprep.subr.bf16.mxu0 0
      %334 = vmatpush1.bf16.xpose.msra.mxu0 0
      %335 = vmatprep.subr.bf16.mxu0 0
      %336 = vmatpush1.bf16.xpose.msra.mxu0 0
      %337 = vmatprep.subr.bf16.mxu0 0
      %338 = vmatpush1.bf16.xpose.msra.mxu0 0
      %339 = vmatprep.subr.bf16.mxu0 0
      %340 = vmatpush1.bf16.xpose.msra.mxu0 0
      %341 = vmatprep.subr.bf16.mxu0 0
      %342 = vmatpush1.bf16.xpose.msra.mxu0 0
      %343 = vmatprep.subr.bf16.mxu0 0
      %344 = vmatpush1.bf16.xpose.msra.mxu0 0
      %345 = vmatprep.subr.bf16.mxu0 0
      %346 = vmatpush1.bf16.xpose.msra.mxu0 0
      %347 = vmatprep.subr.bf16.mxu0 0
      %348 = vmatpush1.bf16.xpose.msra.mxu0 0
      %349 = vmatprep.subr.bf16.mxu0 0
      %350 = vmatpush1.bf16.xpose.msra.mxu0 0
      %351 = vmatprep.subr.bf16.mxu0 0
      %352 = vmatpush1.bf16.xpose.msra.mxu0 0
      %353 = vmatprep.subr.bf16.mxu0 0
      %354 = vmatpush1.bf16.xpose.msra.mxu0 0
      %355 = vmatprep.mubr.bf16.mxu0 0
      %356 = vmatmul.mubr.bf16.gmra.mrb[0].mxu0 %v318
      %v357 = vpop.f32.mrb[0].mxu0
      %v358 = vadd.f32 0.0, %v357
      %v359 = vpop.f32.mrb[0].mxu0
      %v360 = vpop.f32.mrb[0].mxu0
      %v361 = vpop.f32.mrb[0].mxu0
      %362 = vdwg.mxu0
      %v364 = vsel %vm270, %v258, 0
      %v367 = vsel %vm270, %v262, 0
      %369 = vmatprep.subr.bf16.mxu0 0
      %370 = vmatpush1.bf16.xpose.msra.mxu0 %v367
      %371 = vmatprep.subr.bf16.mxu0 0
      %372 = vmatpush1.bf16.xpose.msra.mxu0 0
      %373 = vmatprep.subr.bf16.mxu0 0
      %374 = vmatpush1.bf16.xpose.msra.mxu0 0
      %375 = vmatprep.subr.bf16.mxu0 0
      %376 = vmatpush1.bf16.xpose.msra.mxu0 0
      %377 = vmatprep.subr.bf16.mxu0 0
      %378 = vmatpush1.bf16.xpose.msra.mxu0 0
      %379 = vmatprep.subr.bf16.mxu0 0
      %380 = vmatpush1.bf16.xpose.msra.mxu0 0
      %381 = vmatprep.subr.bf16.mxu0 0
      %382 = vmatpush1.bf16.xpose.msra.mxu0 0
      %383 = vmatprep.subr.bf16.mxu0 0
      %384 = vmatpush1.bf16.xpose.msra.mxu0 0
      %385 = vmatprep.subr.bf16.mxu0 0
      %386 = vmatpush1.bf16.xpose.msra.mxu0 0
      %387 = vmatprep.subr.bf16.mxu0 0
      %388 = vmatpush1.bf16.xpose.msra.mxu0 0
      %389 = vmatprep.subr.bf16.mxu0 0
      %390 = vmatpush1.bf16.xpose.msra.mxu0 0
      %391 = vmatprep.subr.bf16.mxu0 0
      %392 = vmatpush1.bf16.xpose.msra.mxu0 0
      %393 = vmatprep.subr.bf16.mxu0 0
      %394 = vmatpush1.bf16.xpose.msra.mxu0 0
      %395 = vmatprep.subr.bf16.mxu0 0
      %396 = vmatpush1.bf16.xpose.msra.mxu0 0
      %397 = vmatprep.subr.bf16.mxu0 0
      %398 = vmatpush1.bf16.xpose.msra.mxu0 0
      %399 = vmatprep.subr.bf16.mxu0 0
      %400 = vmatpush1.bf16.xpose.msra.mxu0 0
      %401 = vmatprep.mubr.bf16.mxu0 0
      %402 = vmatmul.mubr.bf16.gmra.mrb[0].mxu0 %v364
      %v403 = vpop.f32.mrb[0].mxu0
      %v404 = vadd.f32 0.0, %v403
      %v405 = vpop.f32.mrb[0].mxu0
      %v406 = vpop.f32.mrb[0].mxu0
      %v407 = vpop.f32.mrb[0].mxu0
      %408 = vdwg.mxu0
      %v410 = vsel %vm270, %v259, 0
      %v413 = vsel %vm270, %v263, 0
      %415 = vmatprep.subr.bf16.mxu0 0
      %416 = vmatpush1.bf16.xpose.msra.mxu0 %v413
      %417 = vmatprep.subr.bf16.mxu0 0
      %418 = vmatpush1.bf16.xpose.msra.mxu0 0
      %419 = vmatprep.subr.bf16.mxu0 0
      %420 = vmatpush1.bf16.xpose.msra.mxu0 0
      %421 = vmatprep.subr.bf16.mxu0 0
      %422 = vmatpush1.bf16.xpose.msra.mxu0 0
      %423 = vmatprep.subr.bf16.mxu0 0
      %424 = vmatpush1.bf16.xpose.msra.mxu0 0
      %425 = vmatprep.subr.bf16.mxu0 0
      %426 = vmatpush1.bf16.xpose.msra.mxu0 0
      %427 = vmatprep.subr.bf16.mxu0 0
      %428 = vmatpush1.bf16.xpose.msra.mxu0 0
      %429 = vmatprep.subr.bf16.mxu0 0
      %430 = vmatpush1.bf16.xpose.msra.mxu0 0
      %431 = vmatprep.subr.bf16.mxu0 0
      %432 = vmatpush1.bf16.xpose.msra.mxu0 0
      %433 = vmatprep.subr.bf16.mxu0 0
      %434 = vmatpush1.bf16.xpose.msra.mxu0 0
      %435 = vmatprep.subr.bf16.mxu0 0
      %436 = vmatpush1.bf16.xpose.msra.mxu0 0
      %437 = vmatprep.subr.bf16.mxu0 0
      %438 = vmatpush1.bf16.xpose.msra.mxu0 0
      %439 = vmatprep.subr.bf16.mxu0 0
      %440 = vmatpush1.bf16.xpose.msra.mxu0 0
      %441 = vmatprep.subr.bf16.mxu0 0
      %442 = vmatpush1.bf16.xpose.msra.mxu0 0
      %443 = vmatprep.subr.bf16.mxu0 0
      %444 = vmatpush1.bf16.xpose.msra.mxu0 0
      %445 = vmatprep.subr.bf16.mxu0 0
      %446 = vmatpush1.bf16.xpose.msra.mxu0 0
      %447 = vmatprep.mubr.bf16.mxu0 0
      %448 = vmatmul.mubr.bf16.gmra.mrb[0].mxu0 %v410
      %v449 = vpop.f32.mrb[0].mxu0
      %v450 = vadd.f32 0.0, %v449
      %v451 = vpop.f32.mrb[0].mxu0
      %v452 = vpop.f32.mrb[0].mxu0
      %v453 = vpop.f32.mrb[0].mxu0
      %454 = vdwg.mxu0
      %v455 = vmul.f32 %v312, 0.35355338
      %v456 = vmul.f32 %v358, 0.35355338
      %v457 = vmul.f32 %v404, 0.35355338
      %v458 = vmul.f32 %v450, 0.35355338
      %v459 = vadd.f32 %v455, %v269
      %v460 = vadd.f32 %v456, %v269
      %v461 = vadd.f32 %v457, %v269
      %v462 = vadd.f32 %v458, %v269
      %v463 = vsel %vm270, %v459, -inf
      %464 = vmax.xlane.f32.xlu0 %v463
      %v465 = vpop.xlane.xlu0 %464
      %v466 = vsel %vm270, %v460, -inf
      %467 = vmax.xlane.f32.xlu0 %v466
      %v468 = vpop.xlane.xlu0 %467
      %v469 = vsel %vm270, %v461, -inf
      %470 = vmax.xlane.f32.xlu0 %v469
      %v471 = vpop.xlane.xlu0 %470
      %v472 = vsel %vm270, %v462, -inf
      %473 = vmax.xlane.f32.xlu0 %v472
      %v474 = vpop.xlane.xlu0 %473
      %v475 = vsub.f32 %v459, %v465
      %v476 = vsub.f32 %v460, %v468
      %v477 = vsub.f32 %v461, %v471
      %v478 = vsub.f32 %v462, %v474
      %v479 = vmul.f32 %v475, 1.442695
      %v480 = vpow.pop %v479
      %v481 = vmul.f32 %v476, 1.442695
      %v482 = vpow.pop %v481
      %v483 = vmul.f32 %v477, 1.442695
      %v484 = vpow.pop %v483
      %v485 = vmul.f32 %v478, 1.442695
      %v486 = vpow.pop %v485
      %v487 = vsel %vm270, %v480, 0.0
      %488 = vadd.xlane.f32.xlu0 %v487
      %v489 = vpop.xlane.xlu0 %488
      %v490 = vsel %vm270, %v482, 0.0
      %491 = vadd.xlane.f32.xlu0 %v490
      %v492 = vpop.xlane.xlu0 %491
      %v493 = vsel %vm270, %v484, 0.0
      %494 = vadd.xlane.f32.xlu0 %v493
      %v495 = vpop.xlane.xlu0 %494
      %v496 = vsel %vm270, %v486, 0.0
      %497 = vadd.xlane.f32.xlu0 %v496
      %v498 = vpop.xlane.xlu0 %497
      %v499 = vrcp.pop %v489
      %v500 = vrcp.pop %v492
      %v501 = vrcp.pop %v495
      %v502 = vrcp.pop %v498
      %v503 = vmul.f32 %v480, %v499
      %v504 = vmul.f32 %v482, %v500
      %v505 = vmul.f32 %v484, %v501
      %v506 = vmul.f32 %v486, %v502
      %v507 = vpack.c.bf16 %v503, %v503
      %v508 = vpack.c.bf16 %v504, %v504
      %v509 = vpack.c.bf16 %v505, %v505
      %v510 = vpack.c.bf16 %v506, %v506
      %v512 = vsel %vm270, %v507, 0
      %vm514 = vcmask 1043456
      %v516 = vsel %vm514, %v264, 0
      %518 = vmatprep.subr.bf16.mxu0 0
      %519 = vmatpush1.bf16.msra.mxu0 %v516
      %520 = vmatprep.subr.bf16.mxu0 0
      %521 = vmatpush1.bf16.msra.mxu0 0
      %522 = vmatprep.subr.bf16.mxu0 0
      %523 = vmatpush1.bf16.msra.mxu0 0
      %524 = vmatprep.subr.bf16.mxu0 0
      %525 = vmatpush1.bf16.msra.mxu0 0
      %526 = vmatprep.subr.bf16.mxu0 0
      %527 = vmatpush1.bf16.msra.mxu0 0
      %528 = vmatprep.subr.bf16.mxu0 0
      %529 = vmatpush1.bf16.msra.mxu0 0
      %530 = vmatprep.subr.bf16.mxu0 0
      %531 = vmatpush1.bf16.msra.mxu0 0
      %532 = vmatprep.subr.bf16.mxu0 0
      %533 = vmatpush1.bf16.msra.mxu0 0
      %534 = vmatprep.subr.bf16.mxu0 0
      %535 = vmatpush1.bf16.msra.mxu0 0
      %536 = vmatprep.subr.bf16.mxu0 0
      %537 = vmatpush1.bf16.msra.mxu0 0
      %538 = vmatprep.subr.bf16.mxu0 0
      %539 = vmatpush1.bf16.msra.mxu0 0
      %540 = vmatprep.subr.bf16.mxu0 0
      %541 = vmatpush1.bf16.msra.mxu0 0
      %542 = vmatprep.subr.bf16.mxu0 0
      %543 = vmatpush1.bf16.msra.mxu0 0
      %544 = vmatprep.subr.bf16.mxu0 0
      %545 = vmatpush1.bf16.msra.mxu0 0
      %546 = vmatprep.subr.bf16.mxu0 0
      %547 = vmatpush1.bf16.msra.mxu0 0
      %548 = vmatprep.subr.bf16.mxu0 0
      %549 = vmatpush1.bf16.msra.mxu0 0
      %550 = vmatprep.mubr.bf16.mxu0 0
      %551 = vmatmul.mubr.bf16.gmra.mrb[0].mxu0 %v512
      %v552 = vpop.f32.mrb[0].mxu0
      %v553 = vadd.f32 0.0, %v552
      %v554 = vpop.f32.mrb[0].mxu0
      %v555 = vpop.f32.mrb[0].mxu0
      %v556 = vpop.f32.mrb[0].mxu0
      %557 = vdwg.mxu0
      %v559 = vsel %vm270, %v508, 0
      %v562 = vsel %vm514, %v265, 0
      %564 = vmatprep.subr.bf16.mxu0 0
      %565 = vmatpush1.bf16.msra.mxu0 %v562
      %566 = vmatprep.subr.bf16.mxu0 0
      %567 = vmatpush1.bf16.msra.mxu0 0
      %568 = vmatprep.subr.bf16.mxu0 0
      %569 = vmatpush1.bf16.msra.mxu0 0
      %570 = vmatprep.subr.bf16.mxu0 0
      %571 = vmatpush1.bf16.msra.mxu0 0
      %572 = vmatprep.subr.bf16.mxu0 0
      %573 = vmatpush1.bf16.msra.mxu0 0
      %574 = vmatprep.subr.bf16.mxu0 0
      %575 = vmatpush1.bf16.msra.mxu0 0
      %576 = vmatprep.subr.bf16.mxu0 0
      %577 = vmatpush1.bf16.msra.mxu0 0
      %578 = vmatprep.subr.bf16.mxu0 0
      %579 = vmatpush1.bf16.msra.mxu0 0
      %580 = vmatprep.subr.bf16.mxu0 0
      %581 = vmatpush1.bf16.msra.mxu0 0
      %582 = vmatprep.subr.bf16.mxu0 0
      %583 = vmatpush1.bf16.msra.mxu0 0
      %584 = vmatprep.subr.bf16.mxu0 0
      %585 = vmatpush1.bf16.msra.mxu0 0
      %586 = vmatprep.subr.bf16.mxu0 0
      %587 = vmatpush1.bf16.msra.mxu0 0
      %588 = vmatprep.subr.bf16.mxu0 0
      %589 = vmatpush1.bf16.msra.mxu0 0
      %590 = vmatprep.subr.bf16.mxu0 0
      %591 = vmatpush1.bf16.msra.mxu0 0
      %592 = vmatprep.subr.bf16.mxu0 0
      %593 = vmatpush1.bf16.msra.mxu0 0
      %594 = vmatprep.subr.bf16.mxu0 0
      %595 = vmatpush1.bf16.msra.mxu0 0
      %596 = vmatprep.mubr.bf16.mxu0 0
      %597 = vmatmul.mubr.bf16.gmra.mrb[0].mxu0 %v559
      %v598 = vpop.f32.mrb[0].mxu0
      %v599 = vadd.f32 0.0, %v598
      %v600 = vpop.f32.mrb[0].mxu0
      %v601 = vpop.f32.mrb[0].mxu0
      %v602 = vpop.f32.mrb[0].mxu0
      %603 = vdwg.mxu0
      %v605 = vsel %vm270, %v509, 0
      %v608 = vsel %vm514, %v266, 0
      %610 = vmatprep.subr.bf16.mxu0 0
      %611 = vmatpush1.bf16.msra.mxu0 %v608
      %612 = vmatprep.subr.bf16.mxu0 0
      %613 = vmatpush1.bf16.msra.mxu0 0
      %614 = vmatprep.subr.bf16.mxu0 0
      %615 = vmatpush1.bf16.msra.mxu0 0
      %616 = vmatprep.subr.bf16.mxu0 0
      %617 = vmatpush1.bf16.msra.mxu0 0
      %618 = vmatprep.subr.bf16.mxu0 0
      %619 = vmatpush1.bf16.msra.mxu0 0
      %620 = vmatprep.subr.bf16.mxu0 0
      %621 = vmatpush1.bf16.msra.mxu0 0
      %622 = vmatprep.subr.bf16.mxu0 0
      %623 = vmatpush1.bf16.msra.mxu0 0
      %624 = vmatprep.subr.bf16.mxu0 0
      %625 = vmatpush1.bf16.msra.mxu0 0
      %626 = vmatprep.subr.bf16.mxu0 0
      %627 = vmatpush1.bf16.msra.mxu0 0
      %628 = vmatprep.subr.bf16.mxu0 0
      %629 = vmatpush1.bf16.msra.mxu0 0
      %630 = vmatprep.subr.bf16.mxu0 0
      %631 = vmatpush1.bf16.msra.mxu0 0
      %632 = vmatprep.subr.bf16.mxu0 0
      %633 = vmatpush1.bf16.msra.mxu0 0
      %634 = vmatprep.subr.bf16.mxu0 0
      %635 = vmatpush1.bf16.msra.mxu0 0
      %636 = vmatprep.subr.bf16.mxu0 0
      %637 = vmatpush1.bf16.msra.mxu0 0
      %638 = vmatprep.subr.bf16.mxu0 0
      %639 = vmatpush1.bf16.msra.mxu0 0
      %640 = vmatprep.subr.bf16.mxu0 0
      %641 = vmatpush1.bf16.msra.mxu0 0
      %642 = vmatprep.mubr.bf16.mxu0 0
      %643 = vmatmul.mubr.bf16.gmra.mrb[0].mxu0 %v605
      %v644 = vpop.f32.mrb[0].mxu0
      %v645 = vadd.f32 0.0, %v644
      %v646 = vpop.f32.mrb[0].mxu0
      %v647 = vpop.f32.mrb[0].mxu0
      %v648 = vpop.f32.mrb[0].mxu0
      %649 = vdwg.mxu0
      %v651 = vsel %vm270, %v510, 0
      %v654 = vsel %vm514, %v267, 0
      %656 = vmatprep.subr.bf16.mxu0 0
      %657 = vmatpush1.bf16.msra.mxu0 %v654
      %658 = vmatprep.subr.bf16.mxu0 0
      %659 = vmatpush1.bf16.msra.mxu0 0
      %660 = vmatprep.subr.bf16.mxu0 0
      %661 = vmatpush1.bf16.msra.mxu0 0
      %662 = vmatprep.subr.bf16.mxu0 0
      %663 = vmatpush1.bf16.msra.mxu0 0
      %664 = vmatprep.subr.bf16.mxu0 0
      %665 = vmatpush1.bf16.msra.mxu0 0
      %666 = vmatprep.subr.bf16.mxu0 0
      %667 = vmatpush1.bf16.msra.mxu0 0
      %668 = vmatprep.subr.bf16.mxu0 0
      %669 = vmatpush1.bf16.msra.mxu0 0
      %670 = vmatprep.subr.bf16.mxu0 0
      %671 = vmatpush1.bf16.msra.mxu0 0
      %672 = vmatprep.subr.bf16.mxu0 0
      %673 = vmatpush1.bf16.msra.mxu0 0
      %674 = vmatprep.subr.bf16.mxu0 0
      %675 = vmatpush1.bf16.msra.mxu0 0
      %676 = vmatprep.subr.bf16.mxu0 0
      %677 = vmatpush1.bf16.msra.mxu0 0
      %678 = vmatprep.subr.bf16.mxu0 0
      %679 = vmatpush1.bf16.msra.mxu0 0
      %680 = vmatprep.subr.bf16.mxu0 0
      %681 = vmatpush1.bf16.msra.mxu0 0
      %682 = vmatprep.subr.bf16.mxu0 0
      %683 = vmatpush1.bf16.msra.mxu0 0
      %684 = vmatprep.subr.bf16.mxu0 0
      %685 = vmatpush1.bf16.msra.mxu0 0
      %686 = vmatprep.subr.bf16.mxu0 0
      %687 = vmatpush1.bf16.msra.mxu0 0
      %688 = vmatprep.mubr.bf16.mxu0 0
      %689 = vmatmul.mubr.bf16.gmra.mrb[0].mxu0 %v651
      %v690 = vpop.f32.mrb[0].mxu0
      %v691 = vadd.f32 0.0, %v690
      %v692 = vpop.f32.mrb[0].mxu0
      %v693 = vpop.f32.mrb[0].mxu0
      %v694 = vpop.f32.mrb[0].mxu0
      %695 = vdwg.mxu0
      %v696 = vpack.c.bf16 %v553, %v553
      %v697 = vpack.c.bf16 %v599, %v599
      %v698 = vpack.c.bf16 %v645, %v645
      %v699 = vpack.c.bf16 %v691, %v691
      %vm700 = vcmask 60416
      %701 = vst.msk [vmem:[%s254] sm:$0xf] %vm700, %v696
      %702 = vst.msk [vmem:[%s254 + $0x4] sm:$0xf] %vm700, %v697
      %703 = vst.msk [vmem:[%s254 + $0x8] sm:$0xf] %vm700, %v698
      %704 = vst.msk [vmem:[%s254 + $0xc] sm:$0xf] %vm700, %v699
      %p705 = scmp.lt.s32.totalorder %s15, 1
      %s706 = scalar_select %p705, %s15, 1
      %s707 = smul.addr %s706, 4
      %s708 = smul.addr %s707, 4
      %s709 = scalar_lea.vmem %s4, %s708
      // Predicated region
      $region37: #{transformer_forward.40} parent=35 // pred_check
        %p710 = pneg %p137
      $region38: #{transformer_forward.40} parent=35 // pred_check_branch
        %712 = sbr.rel (%p710) target = $region40
      $region39: #{transformer_forward.40} parent=35 // pred_region
        _
      $region40: #{transformer_forward.40} parent=35 // pred_fallthru
        _
    $region36: #{transformer_forward.40} parent=5 // pred_fallthru
      _
    %p713 = scmp.le.s32.totalorder 2, %s10
    // Predicated region
    $region41: #{transformer_forward.40} parent=5 // pred_check
      %p714 = pneg %p713
    $region42: #{transformer_forward.40} parent=5 // pred_check_branch
      %716 = sbr.rel (%p714) target = $region44
    $region43: #{transformer_forward.40} parent=5 // pred_region
      %s717 = ssub.s32 %s10, 2
      // Predicated region
      $region45: #{transformer_forward.40} parent=43 // pred_check
        %p718 = pneg %p143
      $region46: #{transformer_forward.40} parent=43 // pred_check_branch
        %720 = sbr.rel (%p718) target = $region48
      $region47: #{transformer_forward.40} parent=43 // pred_region
        %p721 = scmp.lt.s32.totalorder %s16, 1
        %s722 = scalar_select %p721, %s16, 1
        %s723 = smul.addr %s722, 4
        %s724 = smul.addr %s723, 4
        %s725 = scalar_lea.vmem %s4, %s724
      $region48: #{transformer_forward.40} parent=43 // pred_fallthru
        _
    $region44: #{transformer_forward.40} parent=5 // pred_fallthru
      _
  $region6: #{transformer_forward.40} parent=0 // loop_footer
    %s14 = sadd.s32 1, %s10
  $region7: #{transformer_forward.40} parent=0 // loop_footer_branch
    %9 = sbr.rel target = $region3
  $region8: #{transformer_forward.40} parent=0 // loop_exit
    _

// kernel: transformer_forward.33
$region0: #{transformer_forward.33}
  #allocation0 [shape = 'u32[]', space=smem, size = 0x4, offset = 0x4, fixed_abs, tag = 'smem constant byte address 0x4 - core index']
  #allocation1 [shape = 'u32[144,128]{1,0:T(1,128)}', space=vmem, size = 0x12000, scoped, tag = 'internal scratch']
  %s0 = inlined_call_operand.vmem [shape: bf16[16,128], index: 0, kind: input, shape index: {}]
  %s1 = inlined_call_operand.vmem [shape: bf16[128,32], index: 1, kind: input, shape index: {}]
  %s2 = inlined_call_operand.vmem [shape: f32[1,32], index: 2, kind: input, shape index: {}]
  %s3 = inlined_call_operand.vmem [shape: f32[16,32], index: 3, kind: input, shape index: {}]
  %s4 = inlined_call_operand.vmem [shape: f32[16,32], index: 4, kind: output, shape index: {}]
  %s5 = sld [smem:[#allocation0]]
  $region26: #{transformer_forward.33} parent=0
    _
  %s7 = ssub.s32 1, %s5
  %s8 = scalar_select 0, %s7, %s5
  // Predicated region
  $region2: #{transformer_forward.33} parent=0 // pred_check
    _
  $region3: #{transformer_forward.33} parent=0 // pred_check_branch
    %10 = sbr.rel (0) target = $region5
  $region4: #{transformer_forward.33} parent=0 // pred_region
    _
  $region5: #{transformer_forward.33} parent=0 // pred_fallthru
    _
  // Predicated region
  $region6: #{transformer_forward.33} parent=0 // pred_check
    _
  $region7: #{transformer_forward.33} parent=0 // pred_check_branch
    %12 = sbr.rel (0) target = $region9
  $region8: #{transformer_forward.33} parent=0 // pred_region
    _
  $region9: #{transformer_forward.33} parent=0 // pred_fallthru
    _
  // Predicated region
  $region10: #{transformer_forward.33} parent=0 // pred_check
    _
  $region11: #{transformer_forward.33} parent=0 // pred_check_branch
    %14 = sbr.rel (0) target = $region13
  $region12: #{transformer_forward.33} parent=0 // pred_region
    _
  $region13: #{transformer_forward.33} parent=0 // pred_fallthru
    _
  // Predicated region
  $region14: #{transformer_forward.33} parent=0 // pred_check
    _
  $region15: #{transformer_forward.33} parent=0 // pred_check_branch
    %16 = sbr.rel (0) target = $region17
  $region16: #{transformer_forward.33} parent=0 // pred_region
    _
  $region17: #{transformer_forward.33} parent=0 // pred_fallthru
    _
  %v18 = vld [vmem:[%s0] sm:$0xf]
  %v19 = vld [vmem:[%s0 + $0x4] sm:$0xf]
  %v20 = vld [vmem:[%s1] sm:$0xf]
  %v21 = vld [vmem:[%s1 + $0x4] sm:$0xf]
  %v22 = vld [vmem:[%s1 + $0x8] sm:$0xf]
  %v23 = vld [vmem:[%s1 + $0xc] sm:$0xf]
  %v24 = vld [vmem:[%s1 + $0x10] sm:$0xf]
  %v25 = vld [vmem:[%s1 + $0x14] sm:$0xf]
  %v26 = vld [vmem:[%s1 + $0x18] sm:$0xf]
  %v27 = vld [vmem:[%s1 + $0x1c] sm:$0xf]
  %v28 = vld [vmem:[%s1 + $0x20] sm:$0xf]
  %v29 = vld [vmem:[%s1 + $0x24] sm:$0xf]
  %v30 = vld [vmem:[%s1 + $0x28] sm:$0xf]
  %v31 = vld [vmem:[%s1 + $0x2c] sm:$0xf]
  %v32 = vld [vmem:[%s1 + $0x30] sm:$0xf]
  %v33 = vld [vmem:[%s1 + $0x34] sm:$0xf]
  %v34 = vld [vmem:[%s1 + $0x38] sm:$0xf]
  %v35 = vld [vmem:[%s1 + $0x3c] sm:$0xf]
  %v36 = vld [vmem:[%s2] sm:$0x1]
  %v38 = vlaneseq
  %v39 = vshrl.u32 %v38, 7
  %v40 = vsub.s32 0, %v39
  %v41 = vrot.slane %v36, %v40
  %v45 = vunpack.c.l.b16 %v18
  %v46 = vunpack.c.l.b16 %v19
  %v47 = vpack.c.b16 %v46, %v45
  %v65 = vunpack.c.l.b16 %v20
  %v66 = vunpack.c.l.b16 %v21
  %v67 = vunpack.c.l.b16 %v22
  %v68 = vunpack.c.l.b16 %v23
  %v69 = vunpack.c.l.b16 %v24
  %v70 = vunpack.c.l.b16 %v25
  %v71 = vunpack.c.l.b16 %v26
  %v72 = vunpack.c.l.b16 %v27
  %v73 = vunpack.c.l.b16 %v28
  %v74 = vunpack.c.l.b16 %v29
  %v75 = vunpack.c.l.b16 %v30
  %v76 = vunpack.c.l.b16 %v31
  %v77 = vunpack.c.l.b16 %v32
  %v78 = vunpack.c.l.b16 %v33
  %v79 = vunpack.c.l.b16 %v34
  %v80 = vunpack.c.l.b16 %v35
  %v81 = vpack.c.b16 %v66, %v65
  %v82 = vpack.c.b16 %v68, %v67
  %v83 = vpack.c.b16 %v70, %v69
  %v84 = vpack.c.b16 %v72, %v71
  %v85 = vpack.c.b16 %v74, %v73
  %v86 = vpack.c.b16 %v76, %v75
  %v87 = vpack.c.b16 %v78, %v77
  %v88 = vpack.c.b16 %v80, %v79
  %97 = vmatprep.subr.bf16.mxu0 0
  %98 = vmatpush1.bf16.msra.mxu0 %v81
  %99 = vmatprep.subr.bf16.mxu0 0
  %100 = vmatpush1.bf16.msra.mxu0 %v82
  %101 = vmatprep.subr.bf16.mxu0 0
  %102 = vmatpush1.bf16.msra.mxu0 %v83
  %103 = vmatprep.subr.bf16.mxu0 0
  %104 = vmatpush1.bf16.msra.mxu0 %v84
  %105 = vmatprep.subr.bf16.mxu0 0
  %106 = vmatpush1.bf16.msra.mxu0 %v85
  %107 = vmatprep.subr.bf16.mxu0 0
  %108 = vmatpush1.bf16.msra.mxu0 %v86
  %109 = vmatprep.subr.bf16.mxu0 0
  %110 = vmatpush1.bf16.msra.mxu0 %v87
  %111 = vmatprep.subr.bf16.mxu0 0
  %112 = vmatpush1.bf16.msra.mxu0 %v88
  %113 = vmatprep.subr.bf16.mxu0 0
  %114 = vmatpush1.bf16.msra.mxu0 0
  %115 = vmatprep.subr.bf16.mxu0 0
  %116 = vmatpush1.bf16.msra.mxu0 0
  %117 = vmatprep.subr.bf16.mxu0 0
  %118 = vmatpush1.bf16.msra.mxu0 0
  %119 = vmatprep.subr.bf16.mxu0 0
  %120 = vmatpush1.bf16.msra.mxu0 0
  %121 = vmatprep.subr.bf16.mxu0 0
  %122 = vmatpush1.bf16.msra.mxu0 0
  %123 = vmatprep.subr.bf16.mxu0 0
  %124 = vmatpush1.bf16.msra.mxu0 0
  %125 = vmatprep.subr.bf16.mxu0 0
  %126 = vmatpush1.bf16.msra.mxu0 0
  %127 = vmatprep.subr.bf16.mxu0 0
  %128 = vmatpush1.bf16.msra.mxu0 0
  %129 = vmatprep.mubr.bf16.mxu0 0
  %130 = vmatmul.mubr.bf16.gmra.mrb[0].mxu0 %v47
  %v131 = vpop.f32.mrb[0].mxu0
  %v132 = vadd.f32 %v41, %v131
  %v133 = vpop.f32.mrb[0].mxu0
  %v134 = vpop.f32.mrb[0].mxu0
  %v135 = vadd.f32 %v41, %v134
  %v136 = vpop.f32.mrb[0].mxu0
  %137 = vdwg.mxu0
  %v138 = vld [vmem:[%s3] sm:$0xff]
  %v139 = vld [vmem:[%s3 + $0x8] sm:$0xff]
  %v140 = vadd.f32 %v132, %v138
  %v141 = vadd.f32 %v135, %v139
  %vm142 = vcmask 261120
  %143 = vst.msk [vmem:[%s4] sm:$0xff] %vm142, %v140
  %144 = vst.msk [vmem:[%s4 + $0x8] sm:$0xff] %vm142, %v141
  // Predicated region
  $region18: #{transformer_forward.33} parent=0 // pred_check
    _
  $region19: #{transformer_forward.33} parent=0 // pred_check_branch
    %146 = sbr.rel (0) target = $region21
  $region20: #{transformer_forward.33} parent=0 // pred_region
    _
  $region21: #{transformer_forward.33} parent=0 // pred_fallthru
    _
  // Predicated region
  $region22: #{transformer_forward.33} parent=0 // pred_check
    _
  $region23: #{transformer_forward.33} parent=0 // pred_check_branch
    %148 = sbr.rel (0) target = $region25
  $region24: #{transformer_forward.33} parent=0 // pred_region
    _
  $region25: #{transformer_forward.33} parent=0 // pred_fallthru
    _

// kernel: transformer_forward.32
$region0: #{transformer_forward.32}
  #allocation0 [shape = 'u32[]', space=smem, size = 0x4, offset = 0x4, fixed_abs, tag = 'smem constant byte address 0x4 - core index']
  #allocation1 [shape = 'u32[144,128]{1,0:T(1,128)}', space=vmem, size = 0x12000, scoped, tag = 'internal scratch']
  %s0 = inlined_call_operand.vmem [shape: f32[16,32], index: 0, kind: input, shape index: {}]
  %s1 = inlined_call_operand.vmem [shape: bf16[32,128], index: 1, kind: input, shape index: {}]
  %s2 = inlined_call_operand.vmem [shape: f32[1,32], index: 2, kind: input, shape index: {}]
  %s3 = inlined_call_operand.vmem [shape: f32[1,32], index: 3, kind: input, shape index: {}]
  %s4 = inlined_call_operand.vmem [shape: f32[1,128], index: 4, kind: input, shape index: {}]
  %s5 = inlined_call_operand.vmem [shape: bf16[16,128], index: 5, kind: output, shape index: {}]
  %s6 = sld [smem:[#allocation0]]
  $region30: #{transformer_forward.32} parent=0
    _
  %s8 = ssub.s32 1, %s6
  %s9 = scalar_select 0, %s8, %s6
  // Predicated region
  $region2: #{transformer_forward.32} parent=0 // pred_check
    _
  $region3: #{transformer_forward.32} parent=0 // pred_check_branch
    %11 = sbr.rel (0) target = $region5
  $region4: #{transformer_forward.32} parent=0 // pred_region
    _
  $region5: #{transformer_forward.32} parent=0 // pred_fallthru
    _
  // Predicated region
  $region6: #{transformer_forward.32} parent=0 // pred_check
    _
  $region7: #{transformer_forward.32} parent=0 // pred_check_branch
    %13 = sbr.rel (0) target = $region9
  $region8: #{transformer_forward.32} parent=0 // pred_region
    _
  $region9: #{transformer_forward.32} parent=0 // pred_fallthru
    _
  // Predicated region
  $region10: #{transformer_forward.32} parent=0 // pred_check
    _
  $region11: #{transformer_forward.32} parent=0 // pred_check_branch
    %15 = sbr.rel (0) target = $region13
  $region12: #{transformer_forward.32} parent=0 // pred_region
    _
  $region13: #{transformer_forward.32} parent=0 // pred_fallthru
    _
  // Predicated region
  $region14: #{transformer_forward.32} parent=0 // pred_check
    _
  $region15: #{transformer_forward.32} parent=0 // pred_check_branch
    %17 = sbr.rel (0) target = $region17
  $region16: #{transformer_forward.32} parent=0 // pred_region
    _
  $region17: #{transformer_forward.32} parent=0 // pred_fallthru
    _
  // Predicated region
  $region18: #{transformer_forward.32} parent=0 // pred_check
    _
  $region19: #{transformer_forward.32} parent=0 // pred_check_branch
    %19 = sbr.rel (0) target = $region21
  $region20: #{transformer_forward.32} parent=0 // pred_region
    _
  $region21: #{transformer_forward.32} parent=0 // pred_fallthru
    _
  %v21 = vld [vmem:[%s0] sm:$0xff]
  %v22 = vld [vmem:[%s0 + $0x8] sm:$0xff]
  %vm23 = vcmask 261120
  %v24 = vsel %vm23, %v21, 0.0
  %25 = vadd.xlane.f32.xlu0 %v24
  %v26 = vpop.xlane.xlu0 %25
  %v27 = vsel %vm23, %v22, 0.0
  %28 = vadd.xlane.f32.xlu0 %v27
  %v29 = vpop.xlane.xlu0 %28
  %v30 = vrcp.pop 32.0
  %v31 = vmul.f32 %v26, %v30
  %v32 = vmul.f32 %v29, %v30
  %v33 = vsub.f32 %v21, %v31
  %v34 = vsub.f32 %v22, %v32
  %v35 = vmul.f32 %v33, %v33
  %v36 = vmul.f32 %v34, %v34
  %v37 = vsel %vm23, %v35, 0.0
  %38 = vadd.xlane.f32.xlu0 %v37
  %v39 = vpop.xlane.xlu0 %38
  %v40 = vsel %vm23, %v36, 0.0
  %41 = vadd.xlane.f32.xlu0 %v40
  %v42 = vpop.xlane.xlu0 %41
  %v43 = vmul.f32 %v39, %v30
  %v44 = vmul.f32 %v42, %v30
  %v45 = vadd.f32 %v43, 1e-05
  %v46 = vadd.f32 %v44, 1e-05
  %v47 = vrsqrt.pop %v45
  %v48 = vrsqrt.pop %v46
  %v49 = vmul.f32 %v33, %v47
  %v50 = vmul.f32 %v34, %v48
  %v51 = vld [vmem:[%s2] sm:$0x1]
  %v53 = vlaneseq
  %v54 = vshrl.u32 %v53, 7
  %v55 = vsub.s32 0, %v54
  %v56 = vrot.slane %v51, %v55
  %v58 = vmul.f32 %v49, %v56
  %v59 = vmul.f32 %v50, %v56
  %v60 = vld [vmem:[%s3] sm:$0x1]
  %v62 = vlaneseq
  %v63 = vshrl.u32 %v62, 7
  %v64 = vsub.s32 0, %v63
  %v65 = vrot.slane %v60, %v64
  %v67 = vadd.f32 %v58, %v65
  %v68 = vadd.f32 %v59, %v65
  %v69 = vpack.c.bf16 %v68, %v67
  %v70 = vld [vmem:[%s1] sm:$0xf]
  %v71 = vld [vmem:[%s1 + $0x4] sm:$0xf]
  %v72 = vld [vmem:[%s1 + $0x8] sm:$0xf]
  %v73 = vld [vmem:[%s1 + $0xc] sm:$0xf]
  %v74 = vld [vmem:[%s4] sm:$0x1]
  %v76 = vlaneseq
  %v77 = vshrl.u32 %v76, 7
  %v78 = vsub.s32 0, %v77
  %v79 = vrot.slane %v74, %v78
  %v85 = vunpack.c.l.b16 %v70
  %v86 = vunpack.c.l.b16 %v71
  %v87 = vunpack.c.l.b16 %v72
  %v88 = vunpack.c.l.b16 %v73
  %v89 = vpack.c.b16 %v86, %v85
  %v90 = vpack.c.b16 %v88, %v87
  %v94 = vsel %vm23, %v69, 0
  %96 = vmatprep.subr.bf16.mxu0 0
  %97 = vmatpush1.bf16.msra.mxu0 %v89
  %98 = vmatprep.subr.bf16.mxu0 0
  %99 = vmatpush1.bf16.msra.mxu0 %v90
  %100 = vmatprep.subr.bf16.mxu0 0
  %101 = vmatpush1.bf16.msra.mxu0 0
  %102 = vmatprep.subr.bf16.mxu0 0
  %103 = vmatpush1.bf16.msra.mxu0 0
  %104 = vmatprep.subr.bf16.mxu0 0
  %105 = vmatpush1.bf16.msra.mxu0 0
  %106 = vmatprep.subr.bf16.mxu0 0
  %107 = vmatpush1.bf16.msra.mxu0 0
  %108 = vmatprep.subr.bf16.mxu0 0
  %109 = vmatpush1.bf16.msra.mxu0 0
  %110 = vmatprep.subr.bf16.mxu0 0
  %111 = vmatpush1.bf16.msra.mxu0 0
  %112 = vmatprep.subr.bf16.mxu0 0
  %113 = vmatpush1.bf16.msra.mxu0 0
  %114 = vmatprep.subr.bf16.mxu0 0
  %115 = vmatpush1.bf16.msra.mxu0 0
  %116 = vmatprep.subr.bf16.mxu0 0
  %117 = vmatpush1.bf16.msra.mxu0 0
  %118 = vmatprep.subr.bf16.mxu0 0
  %119 = vmatpush1.bf16.msra.mxu0 0
  %120 = vmatprep.subr.bf16.mxu0 0
  %121 = vmatpush1.bf16.msra.mxu0 0
  %122 = vmatprep.subr.bf16.mxu0 0
  %123 = vmatpush1.bf16.msra.mxu0 0
  %124 = vmatprep.subr.bf16.mxu0 0
  %125 = vmatpush1.bf16.msra.mxu0 0
  %126 = vmatprep.subr.bf16.mxu0 0
  %127 = vmatpush1.bf16.msra.mxu0 0
  %128 = vmatprep.mubr.bf16.mxu0 0
  %129 = vmatmul.mubr.bf16.gmra.mrb[0].mxu0 %v94
  %v130 = vpop.f32.mrb[0].mxu0
  %v131 = vadd.f32 %v79, %v130
  %v132 = vpop.f32.mrb[0].mxu0
  %v133 = vpop.f32.mrb[0].mxu0
  %v134 = vadd.f32 %v79, %v133
  %v135 = vpop.f32.mrb[0].mxu0
  %136 = vdwg.mxu0
  %v137 = vmax.f32 %v131, 0.0
  %v138 = vmax.f32 %v134, 0.0
  %v139 = vpack.c.bf16 %v138, %v137
  %v141 = vunpack.c.l.b16 %v139
  %v142 = vunpack.c.h.b16 %v139
  %v143 = vpack.c.b16 %v141, %v141
  %v144 = vpack.c.b16 %v142, %v142
  %147 = vst [vmem:[%s5] sm:$0xf] %v143
  %148 = vst [vmem:[%s5 + $0x4] sm:$0xf] %v144
  // Predicated region
  $region22: #{transformer_forward.32} parent=0 // pred_check
    _
  $region23: #{transformer_forward.32} parent=0 // pred_check_branch
    %150 = sbr.rel (0) target = $region25
  $region24: #{transformer_forward.32} parent=0 // pred_region
    _
  $region25: #{transformer_forward.32} parent=0 // pred_fallthru
    _
  // Predicated region
  $region26: #{transformer_forward.32} parent=0 // pred_check
    _
  $region27: #{transformer_forward.32} parent=0 // pred_check_branch
    %152 = sbr.rel (0) target = $region29
  $region28: #{transformer_forward.32} parent=0 // pred_region
    _
  $region29: #{transformer_forward.32} parent=0 // pred_fallthru
    _

// kernel: transformer_forward.43
$region0: #{transformer_forward.43}
  #allocation0 [shape = 'u32[]', space=smem, size = 0x4, offset = 0x4, fixed_abs, tag = 'smem constant byte address 0x4 - core index']
  #allocation1 [shape = 'u32[144,128]{1,0:T(1,128)}', space=vmem, size = 0x12000, scoped, tag = 'internal scratch']
  %s0 = inlined_call_operand.vmem [shape: f32[16,32], index: 0, kind: input, shape index: {}]
  %s1 = inlined_call_operand.vmem [shape: bf16[32,64], index: 1, kind: input, shape index: {}]
  %s2 = inlined_call_operand.vmem [shape: f32[1,32], index: 2, kind: input, shape index: {}]
  %s3 = inlined_call_operand.vmem [shape: f32[1,32], index: 3, kind: input, shape index: {}]
  %s4 = inlined_call_operand.vmem [shape: bf16[16,64], index: 4, kind: output, shape index: {}]
  %s5 = sld [smem:[#allocation0]]
  $region26: #{transformer_forward.43} parent=0
    _
  %s7 = ssub.s32 1, %s5
  %s8 = scalar_select 0, %s7, %s5
  // Predicated region
  $region2: #{transformer_forward.43} parent=0 // pred_check
    _
  $region3: #{transformer_forward.43} parent=0 // pred_check_branch
    %10 = sbr.rel (0) target = $region5
  $region4: #{transformer_forward.43} parent=0 // pred_region
    _
  $region5: #{transformer_forward.43} parent=0 // pred_fallthru
    _
  // Predicated region
  $region6: #{transformer_forward.43} parent=0 // pred_check
    _
  $region7: #{transformer_forward.43} parent=0 // pred_check_branch
    %12 = sbr.rel (0) target = $region9
  $region8: #{transformer_forward.43} parent=0 // pred_region
    _
  $region9: #{transformer_forward.43} parent=0 // pred_fallthru
    _
  // Predicated region
  $region10: #{transformer_forward.43} parent=0 // pred_check
    _
  $region11: #{transformer_forward.43} parent=0 // pred_check_branch
    %14 = sbr.rel (0) target = $region13
  $region12: #{transformer_forward.43} parent=0 // pred_region
    _
  $region13: #{transformer_forward.43} parent=0 // pred_fallthru
    _
  // Predicated region
  $region14: #{transformer_forward.43} parent=0 // pred_check
    _
  $region15: #{transformer_forward.43} parent=0 // pred_check_branch
    %16 = sbr.rel (0) target = $region17
  $region16: #{transformer_forward.43} parent=0 // pred_region
    _
  $region17: #{transformer_forward.43} parent=0 // pred_fallthru
    _
  %v18 = vld [vmem:[%s0] sm:$0xff]
  %v19 = vld [vmem:[%s0 + $0x8] sm:$0xff]
  %vm20 = vcmask 261120
  %v21 = vsel %vm20, %v18, 0.0
  %22 = vadd.xlane.f32.xlu0 %v21
  %v23 = vpop.xlane.xlu0 %22
  %v24 = vsel %vm20, %v19, 0.0
  %25 = vadd.xlane.f32.xlu0 %v24
  %v26 = vpop.xlane.xlu0 %25
  %v27 = vrcp.pop 32.0
  %v28 = vmul.f32 %v23, %v27
  %v29 = vmul.f32 %v26, %v27
  %v30 = vsub.f32 %v18, %v28
  %v31 = vsub.f32 %v19, %v29
  %v32 = vmul.f32 %v30, %v30
  %v33 = vmul.f32 %v31, %v31
  %v34 = vsel %vm20, %v32, 0.0
  %35 = vadd.xlane.f32.xlu0 %v34
  %v36 = vpop.xlane.xlu0 %35
  %v37 = vsel %vm20, %v33, 0.0
  %38 = vadd.xlane.f32.xlu0 %v37
  %v39 = vpop.xlane.xlu0 %38
  %v40 = vmul.f32 %v36, %v27
  %v41 = vmul.f32 %v39, %v27
  %v42 = vadd.f32 %v40, 1e-05
  %v43 = vadd.f32 %v41, 1e-05
  %v44 = vrsqrt.pop %v42
  %v45 = vrsqrt.pop %v43
  %v46 = vmul.f32 %v30, %v44
  %v47 = vmul.f32 %v31, %v45
  %v48 = vld [vmem:[%s2] sm:$0x1]
  %v50 = vlaneseq
  %v51 = vshrl.u32 %v50, 7
  %v52 = vsub.s32 0, %v51
  %v53 = vrot.slane %v48, %v52
  %v55 = vmul.f32 %v46, %v53
  %v56 = vmul.f32 %v47, %v53
  %v57 = vld [vmem:[%s3] sm:$0x1]
  %v59 = vlaneseq
  %v60 = vshrl.u32 %v59, 7
  %v61 = vsub.s32 0, %v60
  %v62 = vrot.slane %v57, %v61
  %v64 = vadd.f32 %v55, %v62
  %v65 = vadd.f32 %v56, %v62
  %v66 = vpack.c.bf16 %v65, %v64
  %v67 = vld [vmem:[%s1] sm:$0xf]
  %v68 = vld [vmem:[%s1 + $0x4] sm:$0xf]
  %v69 = vld [vmem:[%s1 + $0x8] sm:$0xf]
  %v70 = vld [vmem:[%s1 + $0xc] sm:$0xf]
  %v75 = vunpack.c.l.b16 %v67
  %v76 = vunpack.c.l.b16 %v68
  %v77 = vunpack.c.l.b16 %v69
  %v78 = vunpack.c.l.b16 %v70
  %v79 = vpack.c.b16 %v76, %v75
  %v80 = vpack.c.b16 %v78, %v77
  %v84 = vsel %vm20, %v66, 0
  %86 = vmatprep.subr.bf16.mxu0 0
  %87 = vmatpush1.bf16.msra.mxu0 %v79
  %88 = vmatprep.subr.bf16.mxu0 0
  %89 = vmatpush1.bf16.msra.mxu0 %v80
  %90 = vmatprep.subr.bf16.mxu0 0
  %91 = vmatpush1.bf16.msra.mxu0 0
  %92 = vmatprep.subr.bf16.mxu0 0
  %93 = vmatpush1.bf16.msra.mxu0 0
  %94 = vmatprep.subr.bf16.mxu0 0
  %95 = vmatpush1.bf16.msra.mxu0 0
  %96 = vmatprep.subr.bf16.mxu0 0
  %97 = vmatpush1.bf16.msra.mxu0 0
  %98 = vmatprep.subr.bf16.mxu0 0
  %99 = vmatpush1.bf16.msra.mxu0 0
  %100 = vmatprep.subr.bf16.mxu0 0
  %101 = vmatpush1.bf16.msra.mxu0 0
  %102 = vmatprep.subr.bf16.mxu0 0
  %103 = vmatpush1.bf16.msra.mxu0 0
  %104 = vmatprep.subr.bf16.mxu0 0
  %105 = vmatpush1.bf16.msra.mxu0 0
  %106 = vmatprep.subr.bf16.mxu0 0
  %107 = vmatpush1.bf16.msra.mxu0 0
  %108 = vmatprep.subr.bf16.mxu0 0
  %109 = vmatpush1.bf16.msra.mxu0 0
  %110 = vmatprep.subr.bf16.mxu0 0
  %111 = vmatpush1.bf16.msra.mxu0 0
  %112 = vmatprep.subr.bf16.mxu0 0
  %113 = vmatpush1.bf16.msra.mxu0 0
  %114 = vmatprep.subr.bf16.mxu0 0
  %115 = vmatpush1.bf16.msra.mxu0 0
  %116 = vmatprep.subr.bf16.mxu0 0
  %117 = vmatpush1.bf16.msra.mxu0 0
  %118 = vmatprep.mubr.bf16.mxu0 0
  %119 = vmatmul.mubr.bf16.gmra.mrb[0].mxu0 %v84
  %v120 = vpop.f32.mrb[0].mxu0
  %v121 = vadd.f32 0.0, %v120
  %v122 = vpop.f32.mrb[0].mxu0
  %v123 = vpop.f32.mrb[0].mxu0
  %v124 = vadd.f32 0.0, %v123
  %v125 = vpop.f32.mrb[0].mxu0
  %126 = vdwg.mxu0
  %v127 = vpack.c.bf16 %v124, %v121
  %v129 = vunpack.c.l.b16 %v127
  %v130 = vunpack.c.h.b16 %v127
  %v131 = vpack.c.b16 %v129, %v129
  %v132 = vpack.c.b16 %v130, %v130
  %vm135 = vcmask 519168
  %136 = vst.msk [vmem:[%s4] sm:$0xf] %vm135, %v131
  %137 = vst.msk [vmem:[%s4 + $0x4] sm:$0xf] %vm135, %v132
  // Predicated region
  $region18: #{transformer_forward.43} parent=0 // pred_check
    _
  $region19: #{transformer_forward.43} parent=0 // pred_check_branch
    %139 = sbr.rel (0) target = $region21
  $region20: #{transformer_forward.43} parent=0 // pred_region
    _
  $region21: #{transformer_forward.43} parent=0 // pred_fallthru
    _
  // Predicated region
  $region22: #{transformer_forward.43} parent=0 // pred_check
    _
  $region23: #{transformer_forward.43} parent=0 // pred_check_branch
    %141 = sbr.rel (0) target = $region25
  $region24: #{transformer_forward.43} parent=0 // pred_region
    _
  $region25: #{transformer_forward.43} parent=0 // pred_fallthru
    _

// kernel: transformer_forward.57
$region0: #{transformer_forward.57}
  #allocation0 [shape = 'u32[]', space=smem, size = 0x4, offset = 0x4, fixed_abs, tag = 'smem constant byte address 0x4 - core index']
  #allocation1 [shape = 'u32[144,128]{1,0:T(1,128)}', space=vmem, size = 0x12000, scoped, tag = 'internal scratch']
  %s0 = inlined_call_operand.vmem [shape: f32[16,32], index: 0, kind: input, shape index: {}]
  %s1 = inlined_call_operand.vmem [shape: bf16[32,16], index: 1, kind: input, shape index: {}]
  %s2 = inlined_call_operand.vmem [shape: f32[1,32], index: 2, kind: input, shape index: {}]
  %s3 = inlined_call_operand.vmem [shape: f32[1,32], index: 3, kind: input, shape index: {}]
  %s4 = inlined_call_operand.vmem [shape: f32[1,16], index: 4, kind: input, shape index: {}]
  %s5 = inlined_call_operand.hbm [shape: f32[16,16], index: 5, kind: output, shape index: {}]
  %s6 = sld [smem:[#allocation0]]
  $region30: #{transformer_forward.57} parent=0
    _
  %s8 = ssub.s32 1, %s6
  %s9 = scalar_select 0, %s8, %s6
  $region1: #{transformer_forward.57} parent=0
    #allocation2 [shape = 'u8[8192]{0}', space=vmem, size = 0x2000, scoped, tag = 'output window, operand 0, single buffered']
    #allocation3 [shape = 's32[1]{0}', space=sflag, size = 0x4, scoped, tag = 'scoped memory for transformer_forward.57']
    %10 = vsyncpa [#allocation3], 0
    // Predicated region
    $region2: #{transformer_forward.57} parent=1 // pred_check
      _
    $region3: #{transformer_forward.57} parent=1 // pred_check_branch
      %12 = sbr.rel (0) target = $region5
    $region4: #{transformer_forward.57} parent=1 // pred_region
      _
    $region5: #{transformer_forward.57} parent=1 // pred_fallthru
      _
    // Predicated region
    $region6: #{transformer_forward.57} parent=1 // pred_check
      _
    $region7: #{transformer_forward.57} parent=1 // pred_check_branch
      %14 = sbr.rel (0) target = $region9
    $region8: #{transformer_forward.57} parent=1 // pred_region
      _
    $region9: #{transformer_forward.57} parent=1 // pred_fallthru
      _
    // Predicated region
    $region10: #{transformer_forward.57} parent=1 // pred_check
      _
    $region11: #{transformer_forward.57} parent=1 // pred_check_branch
      %16 = sbr.rel (0) target = $region13
    $region12: #{transformer_forward.57} parent=1 // pred_region
      _
    $region13: #{transformer_forward.57} parent=1 // pred_fallthru
      _
    // Predicated region
    $region14: #{transformer_forward.57} parent=1 // pred_check
      _
    $region15: #{transformer_forward.57} parent=1 // pred_check_branch
      %18 = sbr.rel (0) target = $region17
    $region16: #{transformer_forward.57} parent=1 // pred_region
      _
    $region17: #{transformer_forward.57} parent=1 // pred_fallthru
      _
    // Predicated region
    $region18: #{transformer_forward.57} parent=1 // pred_check
      _
    $region19: #{transformer_forward.57} parent=1 // pred_check_branch
      %20 = sbr.rel (0) target = $region21
    $region20: #{transformer_forward.57} parent=1 // pred_region
      _
    $region21: #{transformer_forward.57} parent=1 // pred_fallthru
      _
    %v22 = vld [vmem:[%s0] sm:$0xff]
    %v23 = vld [vmem:[%s0 + $0x8] sm:$0xff]
    %vm24 = vcmask 261120
    %v25 = vsel %vm24, %v22, 0.0
    %26 = vadd.xlane.f32.xlu0 %v25
    %v27 = vpop.xlane.xlu0 %26
    %v28 = vsel %vm24, %v23, 0.0
    %29 = vadd.xlane.f32.xlu0 %v28
    %v30 = vpop.xlane.xlu0 %29
    %v31 = vrcp.pop 32.0
    %v32 = vmul.f32 %v27, %v31
    %v33 = vmul.f32 %v30, %v31
    %v34 = vsub.f32 %v22, %v32
    %v35 = vsub.f32 %v23, %v33
    %v36 = vmul.f32 %v34, %v34
    %v37 = vmul.f32 %v35, %v35
    %v38 = vsel %vm24, %v36, 0.0
    %39 = vadd.xlane.f32.xlu0 %v38
    %v40 = vpop.xlane.xlu0 %39
    %v41 = vsel %vm24, %v37, 0.0
    %42 = vadd.xlane.f32.xlu0 %v41
    %v43 = vpop.xlane.xlu0 %42
    %v44 = vmul.f32 %v40, %v31
    %v45 = vmul.f32 %v43, %v31
    %v46 = vadd.f32 %v44, 1e-05
    %v47 = vadd.f32 %v45, 1e-05
    %v48 = vrsqrt.pop %v46
    %v49 = vrsqrt.pop %v47
    %v50 = vmul.f32 %v34, %v48
    %v51 = vmul.f32 %v35, %v49
    %v52 = vld [vmem:[%s2] sm:$0x1]
    %v54 = vlaneseq
    %v55 = vshrl.u32 %v54, 7
    %v56 = vsub.s32 0, %v55
    %v57 = vrot.slane %v52, %v56
    %v59 = vmul.f32 %v50, %v57
    %v60 = vmul.f32 %v51, %v57
    %v61 = vld [vmem:[%s3] sm:$0x1]
    %v63 = vlaneseq
    %v64 = vshrl.u32 %v63, 7
    %v65 = vsub.s32 0, %v64
    %v66 = vrot.slane %v61, %v65
    %v68 = vadd.f32 %v59, %v66
    %v69 = vadd.f32 %v60, %v66
    %v70 = vpack.c.bf16 %v69, %v68
    %v71 = vld [vmem:[%s1] sm:$0xf]
    %v72 = vld [vmem:[%s1 + $0x4] sm:$0xf]
    %v73 = vld [vmem:[%s1 + $0x8] sm:$0xf]
    %v74 = vld [vmem:[%s1 + $0xc] sm:$0xf]
    %v75 = vld [vmem:[%s4] sm:$0x1]
    %v77 = vlaneseq
    %v78 = vshrl.u32 %v77, 7
    %v79 = vsub.s32 0, %v78
    %v80 = vrot.slane %v75, %v79
    %v86 = vunpack.c.l.b16 %v71
    %v87 = vunpack.c.l.b16 %v72
    %v88 = vunpack.c.l.b16 %v73
    %v89 = vunpack.c.l.b16 %v74
    %v90 = vpack.c.b16 %v87, %v86
    %v91 = vpack.c.b16 %v89, %v88
    %v95 = vsel %vm24, %v70, 0
    %97 = vmatprep.subr.bf16.mxu0 0
    %98 = vmatpush1.bf16.msra.mxu0 %v90
    %99 = vmatprep.subr.bf16.mxu0 0
    %100 = vmatpush1.bf16.msra.mxu0 %v91
    %101 = vmatprep.subr.bf16.mxu0 0
    %102 = vmatpush1.bf16.msra.mxu0 0
    %103 = vmatprep.subr.bf16.mxu0 0
    %104 = vmatpush1.bf16.msra.mxu0 0
    %105 = vmatprep.subr.bf16.mxu0 0
    %106 = vmatpush1.bf16.msra.mxu0 0
    %107 = vmatprep.subr.bf16.mxu0 0
    %108 = vmatpush1.bf16.msra.mxu0 0
    %109 = vmatprep.subr.bf16.mxu0 0
    %110 = vmatpush1.bf16.msra.mxu0 0
    %111 = vmatprep.subr.bf16.mxu0 0
    %112 = vmatpush1.bf16.msra.mxu0 0
    %113 = vmatprep.subr.bf16.mxu0 0
    %114 = vmatpush1.bf16.msra.mxu0 0
    %115 = vmatprep.subr.bf16.mxu0 0
    %116 = vmatpush1.bf16.msra.mxu0 0
    %117 = vmatprep.subr.bf16.mxu0 0
    %118 = vmatpush1.bf16.msra.mxu0 0
    %119 = vmatprep.subr.bf16.mxu0 0
    %120 = vmatpush1.bf16.msra.mxu0 0
    %121 = vmatprep.subr.bf16.mxu0 0
    %122 = vmatpush1.bf16.msra.mxu0 0
    %123 = vmatprep.subr.bf16.mxu0 0
    %124 = vmatpush1.bf16.msra.mxu0 0
    %125 = vmatprep.subr.bf16.mxu0 0
    %126 = vmatpush1.bf16.msra.mxu0 0
    %127 = vmatprep.subr.bf16.mxu0 0
    %128 = vmatpush1.bf16.msra.mxu0 0
    %129 = vmatprep.mubr.bf16.mxu0 0
    %130 = vmatmul.mubr.bf16.gmra.mrb[0].mxu0 %v95
    %v131 = vpop.f32.mrb[0].mxu0
    %v132 = vadd.f32 %v80, %v131
    %v133 = vpop.f32.mrb[0].mxu0
    %v134 = vpop.f32.mrb[0].mxu0
    %v135 = vadd.f32 %v80, %v134
    %v136 = vpop.f32.mrb[0].mxu0
    %137 = vdwg.mxu0
    %vm138 = vcmask 130048
    %v139 = vsel %vm138, %v132, -inf
    %140 = vmax.xlane.f32.xlu0 %v139
    %v141 = vpop.xlane.xlu0 %140
    %v142 = vsel %vm138, %v135, -inf
    %143 = vmax.xlane.f32.xlu0 %v142
    %v144 = vpop.xlane.xlu0 %143
    %v145 = vsub.f32 %v132, %v141
    %v146 = vsub.f32 %v135, %v144
    %v147 = vmul.f32 %v145, 1.442695
    %v148 = vpow.pop %v147
    %v149 = vmul.f32 %v146, 1.442695
    %v150 = vpow.pop %v149
    %v151 = vsel %vm138, %v148, 0.0
    %152 = vadd.xlane.f32.xlu0 %v151
    %v153 = vpop.xlane.xlu0 %152
    %v154 = vsel %vm138, %v150, 0.0
    %155 = vadd.xlane.f32.xlu0 %v154
    %v156 = vpop.xlane.xlu0 %155
    %v157 = vlog2.pop %v153
    %v158 = vmul.f32 %v157, 0.6931472
    %v159 = vlog2.pop %v156
    %v160 = vmul.f32 %v159, 0.6931472
    %v161 = vsub.f32 %v145, %v158
    %v162 = vsub.f32 %v146, %v160
    %163 = vst.msk [vmem:[#allocation2] sm:$0xff] %vm138, %v161
    %164 = vst.msk [vmem:[#allocation2 + $0x8] sm:$0xff] %vm138, %v162
    // Predicated region
    $region22: #{transformer_forward.57} parent=1 // pred_check
      _
    $region23: #{transformer_forward.57} parent=1 // pred_check_branch
      %166 = sbr.rel (0) target = $region25
    $region24: #{transformer_forward.57} parent=1 // pred_region
      %s168 = ssub.s32 256, 256
      %169 = vsyncadd [#allocation3], %s168
      %s170 = sshll.u32 [#allocation2], 4
      %s171 = int_to_ptr.vmem [resolvable:$true] %s170
      %176 = dma.vmem_to_hbm [thread:$0]  %s171, 256, %s5, [#allocation3], 128, 128, 8
    $region25: #{transformer_forward.57} parent=1 // pred_fallthru
      _
    // Predicated region
    $region26: #{transformer_forward.57} parent=1 // pred_check
      _
    $region27: #{transformer_forward.57} parent=1 // pred_check_branch
      %178 = sbr.rel (0) target = $region29
    $region28: #{transformer_forward.57} parent=1 // pred_region
      %179 = dma.done [#allocation3], 256
    $region29: #{transformer_forward.57} parent=1 // pred_fallthru
      _
    %180 = vsyncpa [#allocation3], 1

</llo_original>
